<compile_context>
chip_gen: v7x
topology: tpu7x:2x2x1
jax: 0.10.0
libtpu: 0.0.40
codegen_flags: <defaults>
</compile_context>

<pallas_src>
import numpy as np

import jax
import jax.numpy as jnp
from jax.experimental import pallas as pl
from jax.experimental.pallas import tpu as pltpu


# --------------------------- in-kernel helpers -------------------------------

def _fill_im2col_outer(lhs_ref, act):
    """Fill the kh=0 / kh=2 lane-blocks (and the two H zero-pad rows) of an
    im2col row-window slab whose kh=1 lane-block already holds `act`.

    lhs_ref : VMEM (Hh, 3*Lin) f32.  Lane-block kh of row r holds padded input
              row (r + kh) = act[r + kh - 1] (zeros for the two pad rows).
    act     : (Hh, Lin) f32 lane-dense activation rows.
    Every element of lhs_ref ends up overwritten each call -> no pre-zeroing,
    no stale data across grid iterations.
    """
    hh, lin = act.shape
    zrow = jnp.zeros((1, lin), act.dtype)
    lhs_ref[0:1, 0:lin] = zrow                          # kh=0, r=0     : top pad row
    lhs_ref[1:hh, 0:lin] = act[0:hh - 1]                # kh=0, r>=1    : act[r-1]
    lhs_ref[0:hh - 1, 2 * lin:3 * lin] = act[1:hh]      # kh=2, r<hh-1  : act[r+1]
    lhs_ref[hh - 1:hh, 2 * lin:3 * lin] = zrow          # kh=2, r=hh-1  : bottom pad row


def _fill_im2col(lhs_ref, act):
    """Full im2col row-window build: kh=1 block + outer blocks."""
    lin = act.shape[1]
    lhs_ref[:, lin:2 * lin] = act                       # kh=1 : act[r]
    _fill_im2col_outer(lhs_ref, act)


# --------------------------- fused forward kernel ----------------------------

def fused_forward_kernel(x_ref, r0_ref, e0b_ref, e0s_ref, e0t_ref,
                         r4_ref, b4_ref, r6_ref, b6_ref, fcw_ref, fcb_ref,
                         o_ref, lhs0_ref, lhs4_ref, lhs6_ref):
    cin = x_ref.shape[1]
    h = x_ref.shape[2]
    w = x_ref.shape[3]
    l0 = lhs0_ref.shape[1] // 3          # Cin*W  lanes of conv0's row window

    # ---- children 0..2: Conv2d(4->8) -> eval BatchNorm (affine) -> ReLU -----
    # NCHW -> lane-dense conversion in-kernel: each channel's (H, W) block is
    # stored straight into the kh=1 lane-block of the im2col slab.
    for c in range(cin):
        lhs0_ref[:, l0 + c * w: l0 + (c + 1) * w] = x_ref[0, c]
    act0 = lhs0_ref[:, l0:2 * l0]                        # (H, Cin*W) f32
    _fill_im2col_outer(lhs0_ref, act0)
    acc0 = jnp.dot(lhs0_ref[...].astype(jnp.bfloat16), r0_ref[...],
                   preferred_element_type=jnp.float32)   # (H, W*C0)
    y0 = jnp.maximum((acc0 + e0b_ref[...]) * e0s_ref[...] + e0t_ref[...], 0.0)

    # ---- child 3: MaxPool2d(2) ----------------------------------------------
    # H pairs: sublane pair max.  W pairs: conv0's banded weights emit even-w
    # columns in lanes [:half] and odd-w in [half:], so it is a lane-half max.
    pair = y0.reshape(h // 2, 2, y0.shape[-1])
    hmax = jnp.maximum(pair[:, 0], pair[:, 1])           # (H/2, W*C0)
    half = y0.shape[-1] // 2
    pooled = jnp.maximum(hmax[:, :half], hmax[:, half:]) # (H/2, (W/2)*C0)

    # ---- children 4..5: Conv2d(8->8) -> ReLU ----------------------------------
    _fill_im2col(lhs4_ref, pooled)
    acc4 = jnp.dot(lhs4_ref[...].astype(jnp.bfloat16), r4_ref[...],
                   preferred_element_type=jnp.float32)   # (H/2, (W/2)*C0)
    y4 = jnp.maximum(acc4 + b4_ref[...], 0.0)

    # ---- children 6..7: Conv2d(8->16) -> ReLU ---------------------------------
    _fill_im2col(lhs6_ref, y4)
    acc6 = jnp.dot(lhs6_ref[...].astype(jnp.bfloat16), r6_ref[...],
                   preferred_element_type=jnp.float32)   # (H/2, (W/2)*C6)
    y6 = jnp.maximum(acc6 + b6_ref[...], 0.0)

    # ---- child 8 + flatten + child 9: global avg pool -> Linear(16->10) ------
    # (the 1/(Ho*Wo) scale is folded into fcw on the host)
    ysum = jnp.sum(y6, axis=0, keepdims=True)            # (1, (W/2)*C6)
    logits = jnp.dot(ysum, fcw_ref[...],
                     preferred_element_type=jnp.float32) + fcb_ref[...]
    o_ref[0] = logits.astype(o_ref.dtype)


# ---------------------------------- wrapper -----------------------------------

@jax.jit
def forward(x_nchw, packed):
    """LayerAffinityModule.forward: children 0..9 (flatten before idx 9) as ONE
    fused Pallas kernel; batch grid axis, one image per program."""
    x = x_nchw.astype(jnp.float32)
    n, cin, h, w = x.shape
    ncls = packed["fcb"].shape[-1]
    l0 = packed["r0"].shape[0] // 3
    l4 = packed["r4"].shape[0] // 3
    ho = h // 2

    args = (x, packed["r0"], packed["e0b"], packed["e0s"], packed["e0t"],
            packed["r4"], packed["b4"], packed["r6"], packed["b6"],
            packed["fcw"], packed["fcb"])

    def full_spec(a):
        nd = len(a.shape)
        return pl.BlockSpec(a.shape, lambda b, _nd=nd: (0,) * _nd)

    in_specs = [pl.BlockSpec((1, cin, h, w), lambda b: (b, 0, 0, 0))]
    in_specs += [full_spec(a) for a in args[1:]]

    out = pl.pallas_call(
        fused_forward_kernel,
        out_shape=jax.ShapeDtypeStruct((n, 1, ncls), jnp.float32),
        grid_spec=pltpu.PrefetchScalarGridSpec(
            num_scalar_prefetch=0,
            grid=(n,),
            in_specs=in_specs,
            out_specs=pl.BlockSpec((1, 1, ncls), lambda b: (b, 0, 0)),
            scratch_shapes=[
                pltpu.VMEM((h, 3 * l0), jnp.float32),    # conv0 im2col row window
                pltpu.VMEM((ho, 3 * l4), jnp.float32),   # conv4 im2col row window
                pltpu.VMEM((ho, 3 * l4), jnp.float32),   # conv6 im2col row window
            ]),
        compiler_params=pltpu.CompilerParams(
            dimension_semantics=("parallel",)),
    )(*args)
    return out.reshape(n, ncls)


# --------------------------------- parameters ---------------------------------

def init_params(key):
    ks = jax.random.split(key, 12)

    def nrm(k, shape, s=0.1):
        return (s * jax.random.normal(k, shape)).astype(jnp.float32)

    p = {}
    p["conv0_w"] = nrm(ks[0], (3, 3, 4, 8))    # HWIO, cross-correlation (torch-like)
    p["conv0_b"] = nrm(ks[1], (8,))
    gamma = 1.0 + nrm(ks[2], (8,))
    beta = nrm(ks[3], (8,))
    rmean = nrm(ks[4], (8,))
    rvar = jnp.abs(nrm(ks[5], (8,))) + 1.0
    scale = gamma * jax.lax.rsqrt(rvar + 1e-5)  # eval-mode BN folded to affine
    p["bn1_scale"] = scale
    p["bn1_shift"] = beta - rmean * scale
    p["conv4_w"] = nrm(ks[6], (3, 3, 8, 8))
    p["conv4_b"] = nrm(ks[7], (8,))
    p["conv6_w"] = nrm(ks[8], (3, 3, 8, 16))
    p["conv6_b"] = nrm(ks[9], (16,))
    p["fc_w"] = nrm(ks[10], (16, 10))           # (in, out) == torch weight.T
    p["fc_b"] = nrm(ks[11], (10,))
    return p


def pack_params(p):
    """One-time host-side repack into kernel-ready layouts:
       * each 3x3 conv -> ONE banded bf16 matrix mapping an im2col'd row
         window (3 padded rows, lane-dense) to a full lane-dense output row,
       * conv0's output columns parity-split (even-w | odd-w) so the maxpool
         W-pair max is a lane-half maximum,
       * per-channel bias / BN affine pre-tiled to per-lane vectors,
       * global-avg-pool 1/(Ho*Wo) folded into the FC weight.
    """
    H = W = 16
    CIN, C0, C6 = 4, 8, 16
    HO = WO = 8
    NCLS = 10

    def band(wgt, w_in, w_out, in_lane, out_lane, n_in, n_out):
        wn = np.asarray(wgt, np.float32)
        kh_n, kw_n, ci_n, co_n = wn.shape
        R = np.zeros((kh_n * n_in, n_out), np.float32)
        for kh in range(kh_n):
            for kw in range(kw_n):
                for ww in range(w_out):
                    wi = ww + kw - 1
                    if wi < 0 or wi >= w_in:
                        continue          # 'same' W-padding handled by omission
                    for ci in range(ci_n):
                        for co in range(co_n):
                            R[kh * n_in + in_lane(wi, ci),
                              out_lane(ww, co)] = wn[kh, kw, ci, co]
        return jnp.asarray(R, jnp.bfloat16)

    # conv0: input lanes ci*W + wi (straight from NCHW channel blocks);
    #        output lanes parity*WO*C0 + (w//2)*C0 + co (even-w half | odd-w half)
    r0 = band(p["conv0_w"], W, W,
              lambda wi, ci: ci * W + wi,
              lambda ww, co: (ww % 2) * (WO * C0) + (ww // 2) * C0 + co,
              CIN * W, W * C0)
    # conv4 / conv6: input lanes wi*C0 + ci ; output lanes w*Cout + co
    r4 = band(p["conv4_w"], WO, WO,
              lambda wi, ci: wi * C0 + ci,
              lambda ww, co: ww * C0 + co,
              WO * C0, WO * C0)
    r6 = band(p["conv6_w"], WO, WO,
              lambda wi, ci: wi * C0 + ci,
              lambda ww, co: ww * C6 + co,
              WO * C0, WO * C6)

    def lane_vec(v, reps):
        return jnp.asarray(np.tile(np.asarray(v, np.float32), reps)[None, :])

    fcw_big = np.tile(np.asarray(p["fc_w"], np.float32), (WO, 1)) / float(HO * WO)

    return dict(
        r0=r0,
        e0b=lane_vec(p["conv0_b"], W),         # (1, 128): co = lane % 8
        e0s=lane_vec(p["bn1_scale"], W),
        e0t=lane_vec(p["bn1_shift"], W),
        r4=r4, b4=lane_vec(p["conv4_b"], WO),  # (1, 64)
        r6=r6, b6=lane_vec(p["conv6_b"], WO),  # (1, 128): co = lane % 16
        fcw=jnp.asarray(fcw_big, jnp.float32),                    # (128, 10)
        fcb=jnp.asarray(np.asarray(p["fc_b"], np.float32)[None, :]),
        )


# ----------------------------- pure-JAX reference ------------------------------

def _conv_ref(x, w, b):
    N, H, W, Cin = x.shape
    xp = jnp.pad(x, ((0, 0), (1, 1), (1, 1), (0, 0)))
    acc = jnp.zeros((N, H, W, w.shape[-1]), jnp.float32)
    for kh in range(3):
        for kw in range(3):
            acc = acc + jnp.einsum("nhwc,cd->nhwd",
                                   xp[:, kh:kh + H, kw:kw + W, :], w[kh, kw])
    return acc + b


def reference_forward(x_nchw, p):
    x = jnp.transpose(x_nchw, (0, 2, 3, 1)).astype(jnp.float32)
    y = _conv_ref(x, p["conv0_w"], p["conv0_b"])
    y = jnp.maximum(y * p["bn1_scale"] + p["bn1_shift"], 0.0)
    N, H, W, C = y.shape
    y = jnp.max(y.reshape(N, H // 2, 2, W // 2, 2, C), axis=(2, 4))
    y = jnp.maximum(_conv_ref(y, p["conv4_w"], p["conv4_b"]), 0.0)
    y = jnp.maximum(_conv_ref(y, p["conv6_w"], p["conv6_b"]), 0.0)
    feat = jnp.mean(y, axis=(1, 2))                   # avg pool + flatten
    return feat @ p["fc_w"] + p["fc_b"]


# ------------------------------------ main --------------------------------------

if __name__ == "__main__":
    key = jax.random.PRNGKey(0)
    kx, kp = jax.random.split(key)
    x = jax.random.normal(kx, (2, 4, 16, 16), dtype=jnp.float32)  # NCHW input
    params = init_params(kp)
    packed = pack_params(params)

    out = forward(x, packed)
    out = jax.block_until_ready(out)
    assert out.shape == (2, 10) and out.dtype == jnp.float32

    # correctness check vs. f32 pure-JAX reference (bf16 matmul operands in
    # the kernel give ~1e-3 level drift; 3e-2 is a generous bound)
    ref = reference_forward(x, params)
    max_err = float(jnp.max(jnp.abs(out - ref)))
    assert max_err < 3e-2, f"kernel/reference mismatch: {max_err}"

    print("KERNEL_OK")
</pallas_src>

<mosaic_0001>
module attributes {stable_mosaic.version = 11 : i64} {
  func.func @fused_forward_kernel(%arg0: i32, %arg1: memref<1x4x16x16xf32, #tpu.memory_space<vmem>>, %arg2: memref<192x128xbf16, #tpu.memory_space<vmem>>, %arg3: memref<1x128xf32, #tpu.memory_space<vmem>>, %arg4: memref<1x128xf32, #tpu.memory_space<vmem>>, %arg5: memref<1x128xf32, #tpu.memory_space<vmem>>, %arg6: memref<192x64xbf16, #tpu.memory_space<vmem>>, %arg7: memref<1x64xf32, #tpu.memory_space<vmem>>, %arg8: memref<192x128xbf16, #tpu.memory_space<vmem>>, %arg9: memref<1x128xf32, #tpu.memory_space<vmem>>, %arg10: memref<128x10xf32, #tpu.memory_space<vmem>>, %arg11: memref<1x10xf32, #tpu.memory_space<vmem>>, %arg12: memref<1x1x10xf32, #tpu.memory_space<vmem>>, %arg13: memref<16x192xf32, #tpu.memory_space<vmem>>, %arg14: memref<8x192xf32, #tpu.memory_space<vmem>>, %arg15: memref<8x192xf32, #tpu.memory_space<vmem>>) attributes {dimension_semantics = [#tpu.dimension_semantics<parallel>], iteration_bounds = array<i64: 2>, scalar_prefetch = 0 : i64, scratch_operands = 3 : i64, tpu.core_type = #tpu.core_type<tc>, window_params = [{transform_indices = @transform_0, window_bounds = array<i64: 1, 4, 16, 16>}, {pipeline_mode = #tpu.pipeline_mode<synchronous>, transform_indices = @transform_1, window_bounds = array<i64: 192, 128>}, {pipeline_mode = #tpu.pipeline_mode<synchronous>, transform_indices = @transform_2, window_bounds = array<i64: 1, 128>}, {pipeline_mode = #tpu.pipeline_mode<synchronous>, transform_indices = @transform_3, window_bounds = array<i64: 1, 128>}, {pipeline_mode = #tpu.pipeline_mode<synchronous>, transform_indices = @transform_4, window_bounds = array<i64: 1, 128>}, {pipeline_mode = #tpu.pipeline_mode<synchronous>, transform_indices = @transform_5, window_bounds = array<i64: 192, 64>}, {pipeline_mode = #tpu.pipeline_mode<synchronous>, transform_indices = @transform_6, window_bounds = array<i64: 1, 64>}, {pipeline_mode = #tpu.pipeline_mode<synchronous>, transform_indices = @transform_7, window_bounds = array<i64: 192, 128>}, {pipeline_mode = #tpu.pipeline_mode<synchronous>, transform_indices = @transform_8, window_bounds = array<i64: 1, 128>}, {pipeline_mode = #tpu.pipeline_mode<synchronous>, transform_indices = @transform_9, window_bounds = array<i64: 128, 10>}, {pipeline_mode = #tpu.pipeline_mode<synchronous>, transform_indices = @transform_10, window_bounds = array<i64: 1, 10>}, {transform_indices = @transform_11, window_bounds = array<i64: 1, 1, 10>}]} {
    %c0 = arith.constant 0 : index
    %c0_0 = arith.constant 0 : index
    %c0_1 = arith.constant 0 : index
    %c0_2 = arith.constant 0 : index
    %0 = vector.load %arg1[%c0, %c0_0, %c0_1, %c0_2] : memref<1x4x16x16xf32, #tpu.memory_space<vmem>>, vector<1x1x16x16xf32>
    %1 = vector.shape_cast %0 : vector<1x1x16x16xf32> to vector<16x16xf32>
    %c0_3 = arith.constant 0 : index
    %c64 = arith.constant 64 : index
    %2 = vector.load %arg13[%c0_3, %c64] : memref<16x192xf32, #tpu.memory_space<vmem>>, vector<16x16xf32>
    tpu.vector_store %arg13[%c0_3, %c64], %1 {strides = array<i32>} : memref<16x192xf32, #tpu.memory_space<vmem>>, vector<16x16xf32>,
    %c0_4 = arith.constant 0 : index
    %c1 = arith.constant 1 : index
    %c0_5 = arith.constant 0 : index
    %c0_6 = arith.constant 0 : index
    %3 = vector.load %arg1[%c0_4, %c1, %c0_5, %c0_6] : memref<1x4x16x16xf32, #tpu.memory_space<vmem>>, vector<1x1x16x16xf32>
    %4 = vector.shape_cast %3 : vector<1x1x16x16xf32> to vector<16x16xf32>
    %c0_7 = arith.constant 0 : index
    %c80 = arith.constant 80 : index
    %5 = vector.load %arg13[%c0_7, %c80] : memref<16x192xf32, #tpu.memory_space<vmem>>, vector<16x16xf32>
    tpu.vector_store %arg13[%c0_7, %c80], %4 {strides = array<i32>} : memref<16x192xf32, #tpu.memory_space<vmem>>, vector<16x16xf32>,
    %c0_8 = arith.constant 0 : index
    %c2 = arith.constant 2 : index
    %c0_9 = arith.constant 0 : index
    %c0_10 = arith.constant 0 : index
    %6 = vector.load %arg1[%c0_8, %c2, %c0_9, %c0_10] : memref<1x4x16x16xf32, #tpu.memory_space<vmem>>, vector<1x1x16x16xf32>
    %7 = vector.shape_cast %6 : vector<1x1x16x16xf32> to vector<16x16xf32>
    %c0_11 = arith.constant 0 : index
    %c96 = arith.constant 96 : index
    %8 = vector.load %arg13[%c0_11, %c96] : memref<16x192xf32, #tpu.memory_space<vmem>>, vector<16x16xf32>
    tpu.vector_store %arg13[%c0_11, %c96], %7 {strides = array<i32>} : memref<16x192xf32, #tpu.memory_space<vmem>>, vector<16x16xf32>,
    %c0_12 = arith.constant 0 : index
    %c3 = arith.constant 3 : index
    %c0_13 = arith.constant 0 : index
    %c0_14 = arith.constant 0 : index
    %9 = vector.load %arg1[%c0_12, %c3, %c0_13, %c0_14] : memref<1x4x16x16xf32, #tpu.memory_space<vmem>>, vector<1x1x16x16xf32>
    %10 = vector.shape_cast %9 : vector<1x1x16x16xf32> to vector<16x16xf32>
    %c0_15 = arith.constant 0 : index
    %c112 = arith.constant 112 : index
    %11 = vector.load %arg13[%c0_15, %c112] : memref<16x192xf32, #tpu.memory_space<vmem>>, vector<16x16xf32>
    tpu.vector_store %arg13[%c0_15, %c112], %10 {strides = array<i32>} : memref<16x192xf32, #tpu.memory_space<vmem>>, vector<16x16xf32>,
    %c0_16 = arith.constant 0 : index
    %c64_17 = arith.constant 64 : index
    %12 = vector.load %arg13[%c0_16, %c64_17] : memref<16x192xf32, #tpu.memory_space<vmem>>, vector<16x64xf32>
    %cst = arith.constant 0.000000e+00 : f32
    %13 = vector.broadcast %cst : f32 to vector<1x64xf32>
    %c0_18 = arith.constant 0 : index
    %c0_19 = arith.constant 0 : index
    %14 = vector.load %arg13[%c0_18, %c0_19] : memref<16x192xf32, #tpu.memory_space<vmem>>, vector<1x64xf32>
    tpu.vector_store %arg13[%c0_18, %c0_19], %13 {strides = array<i32>} : memref<16x192xf32, #tpu.memory_space<vmem>>, vector<1x64xf32>,
    %15 = vector.extract_strided_slice %12 {offsets = [0, 0], sizes = [15, 64], strides = [1, 1]} : vector<16x64xf32> to vector<15x64xf32>
    %c1_20 = arith.constant 1 : index
    %c0_21 = arith.constant 0 : index
    %16 = vector.load %arg13[%c1_20, %c0_21] : memref<16x192xf32, #tpu.memory_space<vmem>>, vector<15x64xf32>
    tpu.vector_store %arg13[%c1_20, %c0_21], %15 {strides = array<i32>} : memref<16x192xf32, #tpu.memory_space<vmem>>, vector<15x64xf32>,
    %17 = vector.extract_strided_slice %12 {offsets = [1, 0], sizes = [15, 64], strides = [1, 1]} : vector<16x64xf32> to vector<15x64xf32>
    %c0_22 = arith.constant 0 : index
    %c128 = arith.constant 128 : index
    %18 = vector.load %arg13[%c0_22, %c128] : memref<16x192xf32, #tpu.memory_space<vmem>>, vector<15x64xf32>
    tpu.vector_store %arg13[%c0_22, %c128], %17 {strides = array<i32>} : memref<16x192xf32, #tpu.memory_space<vmem>>, vector<15x64xf32>,
    %c15 = arith.constant 15 : index
    %c128_23 = arith.constant 128 : index
    %19 = vector.load %arg13[%c15, %c128_23] : memref<16x192xf32, #tpu.memory_space<vmem>>, vector<1x64xf32>
    tpu.vector_store %arg13[%c15, %c128_23], %13 {strides = array<i32>} : memref<16x192xf32, #tpu.memory_space<vmem>>, vector<1x64xf32>,
    %c0_24 = arith.constant 0 : index
    %c0_25 = arith.constant 0 : index
    %20 = vector.load %arg13[%c0_24, %c0_25] : memref<16x192xf32, #tpu.memory_space<vmem>>, vector<16x192xf32>
    %21 = arith.truncf %20 : vector<16x192xf32> to vector<16x192xbf16>
    %c0_26 = arith.constant 0 : index
    %c0_27 = arith.constant 0 : index
    %22 = vector.load %arg2[%c0_26, %c0_27] : memref<192x128xbf16, #tpu.memory_space<vmem>>, vector<192x128xbf16>
    %cst_28 = arith.constant dense<0.000000e+00> : vector<16x128xf32>
    %23 = tpu.matmul %21, %22, %cst_28 {dimension_numbers = #tpu.dot_dimension_numbers<[1], [0], [0], [1], [0, 0, 1, 1], [], []>} : vector<16x192xbf16>, vector<192x128xbf16>, vector<16x128xf32> -> vector<16x128xf32>
    %c0_29 = arith.constant 0 : index
    %c0_30 = arith.constant 0 : index
    %24 = vector.load %arg3[%c0_29, %c0_30] : memref<1x128xf32, #tpu.memory_space<vmem>>, vector<1x128xf32>
    %25 = vector.broadcast %24 : vector<1x128xf32> to vector<16x128xf32>
    %26 = arith.addf %23, %25 : vector<16x128xf32>
    %c0_31 = arith.constant 0 : index
    %c0_32 = arith.constant 0 : index
    %27 = vector.load %arg4[%c0_31, %c0_32] : memref<1x128xf32, #tpu.memory_space<vmem>>, vector<1x128xf32>
    %28 = vector.broadcast %27 : vector<1x128xf32> to vector<16x128xf32>
    %29 = arith.mulf %26, %28 : vector<16x128xf32>
    %c0_33 = arith.constant 0 : index
    %c0_34 = arith.constant 0 : index
    %30 = vector.load %arg5[%c0_33, %c0_34] : memref<1x128xf32, #tpu.memory_space<vmem>>, vector<1x128xf32>
    %31 = vector.broadcast %30 : vector<1x128xf32> to vector<16x128xf32>
    %32 = arith.addf %29, %31 : vector<16x128xf32>
    %cst_35 = arith.constant 0.000000e+00 : f32
    %33 = vector.broadcast %cst_35 : f32 to vector<16x128xf32>
    %34 = arith.maximumf %32, %33 : vector<16x128xf32>
    %35 = vector.shape_cast %34 : vector<16x128xf32> to vector<8x2x128xf32>
    %36 = vector.extract_strided_slice %35 {offsets = [0, 0, 0], sizes = [8, 1, 128], strides = [1, 1, 1]} : vector<8x2x128xf32> to vector<8x1x128xf32>
    %37 = vector.shape_cast %36 : vector<8x1x128xf32> to vector<8x128xf32>
    %38 = vector.extract_strided_slice %35 {offsets = [0, 1, 0], sizes = [8, 1, 128], strides = [1, 1, 1]} : vector<8x2x128xf32> to vector<8x1x128xf32>
    %39 = vector.shape_cast %38 : vector<8x1x128xf32> to vector<8x128xf32>
    %40 = arith.maximumf %37, %39 : vector<8x128xf32>
    %41 = vector.extract_strided_slice %40 {offsets = [0, 0], sizes = [8, 64], strides = [1, 1]} : vector<8x128xf32> to vector<8x64xf32>
    %42 = vector.extract_strided_slice %40 {offsets = [0, 64], sizes = [8, 64], strides = [1, 1]} : vector<8x128xf32> to vector<8x64xf32>
    %43 = arith.maximumf %41, %42 : vector<8x64xf32>
    %c0_36 = arith.constant 0 : index
    %c64_37 = arith.constant 64 : index
    %44 = vector.load %arg14[%c0_36, %c64_37] : memref<8x192xf32, #tpu.memory_space<vmem>>, vector<8x64xf32>
    tpu.vector_store %arg14[%c0_36, %c64_37], %43 {strides = array<i32>} : memref<8x192xf32, #tpu.memory_space<vmem>>, vector<8x64xf32>,
    %cst_38 = arith.constant 0.000000e+00 : f32
    %45 = vector.broadcast %cst_38 : f32 to vector<1x64xf32>
    %c0_39 = arith.constant 0 : index
    %c0_40 = arith.constant 0 : index
    %46 = vector.load %arg14[%c0_39, %c0_40] : memref<8x192xf32, #tpu.memory_space<vmem>>, vector<1x64xf32>
    tpu.vector_store %arg14[%c0_39, %c0_40], %45 {strides = array<i32>} : memref<8x192xf32, #tpu.memory_space<vmem>>, vector<1x64xf32>,
    %47 = vector.extract_strided_slice %43 {offsets = [0, 0], sizes = [7, 64], strides = [1, 1]} : vector<8x64xf32> to vector<7x64xf32>
    %c1_41 = arith.constant 1 : index
    %c0_42 = arith.constant 0 : index
    %48 = vector.load %arg14[%c1_41, %c0_42] : memref<8x192xf32, #tpu.memory_space<vmem>>, vector<7x64xf32>
    tpu.vector_store %arg14[%c1_41, %c0_42], %47 {strides = array<i32>} : memref<8x192xf32, #tpu.memory_space<vmem>>, vector<7x64xf32>,
    %49 = vector.extract_strided_slice %43 {offsets = [1, 0], sizes = [7, 64], strides = [1, 1]} : vector<8x64xf32> to vector<7x64xf32>
    %c0_43 = arith.constant 0 : index
    %c128_44 = arith.constant 128 : index
    %50 = vector.load %arg14[%c0_43, %c128_44] : memref<8x192xf32, #tpu.memory_space<vmem>>, vector<7x64xf32>
    tpu.vector_store %arg14[%c0_43, %c128_44], %49 {strides = array<i32>} : memref<8x192xf32, #tpu.memory_space<vmem>>, vector<7x64xf32>,
    %c7 = arith.constant 7 : index
    %c128_45 = arith.constant 128 : index
    %51 = vector.load %arg14[%c7, %c128_45] : memref<8x192xf32, #tpu.memory_space<vmem>>, vector<1x64xf32>
    tpu.vector_store %arg14[%c7, %c128_45], %45 {strides = array<i32>} : memref<8x192xf32, #tpu.memory_space<vmem>>, vector<1x64xf32>,
    %c0_46 = arith.constant 0 : index
    %c0_47 = arith.constant 0 : index
    %52 = vector.load %arg14[%c0_46, %c0_47] : memref<8x192xf32, #tpu.memory_space<vmem>>, vector<8x192xf32>
    %53 = arith.truncf %52 : vector<8x192xf32> to vector<8x192xbf16>
    %c0_48 = arith.constant 0 : index
    %c0_49 = arith.constant 0 : index
    %54 = vector.load %arg6[%c0_48, %c0_49] : memref<192x64xbf16, #tpu.memory_space<vmem>>, vector<192x64xbf16>
    %cst_50 = arith.constant dense<0.000000e+00> : vector<8x64xf32>
    %55 = tpu.matmul %53, %54, %cst_50 {dimension_numbers = #tpu.dot_dimension_numbers<[1], [0], [0], [1], [0, 0, 1, 1], [], []>} : vector<8x192xbf16>, vector<192x64xbf16>, vector<8x64xf32> -> vector<8x64xf32>
    %c0_51 = arith.constant 0 : index
    %c0_52 = arith.constant 0 : index
    %56 = vector.load %arg7[%c0_51, %c0_52] : memref<1x64xf32, #tpu.memory_space<vmem>>, vector<1x64xf32>
    %57 = vector.broadcast %56 : vector<1x64xf32> to vector<8x64xf32>
    %58 = arith.addf %55, %57 : vector<8x64xf32>
    %cst_53 = arith.constant 0.000000e+00 : f32
    %59 = vector.broadcast %cst_53 : f32 to vector<8x64xf32>
    %60 = arith.maximumf %58, %59 : vector<8x64xf32>
    %c0_54 = arith.constant 0 : index
    %c64_55 = arith.constant 64 : index
    %61 = vector.load %arg15[%c0_54, %c64_55] : memref<8x192xf32, #tpu.memory_space<vmem>>, vector<8x64xf32>
    tpu.vector_store %arg15[%c0_54, %c64_55], %60 {strides = array<i32>} : memref<8x192xf32, #tpu.memory_space<vmem>>, vector<8x64xf32>,
    %cst_56 = arith.constant 0.000000e+00 : f32
    %62 = vector.broadcast %cst_56 : f32 to vector<1x64xf32>
    %c0_57 = arith.constant 0 : index
    %c0_58 = arith.constant 0 : index
    %63 = vector.load %arg15[%c0_57, %c0_58] : memref<8x192xf32, #tpu.memory_space<vmem>>, vector<1x64xf32>
    tpu.vector_store %arg15[%c0_57, %c0_58], %62 {strides = array<i32>} : memref<8x192xf32, #tpu.memory_space<vmem>>, vector<1x64xf32>,
    %64 = vector.extract_strided_slice %60 {offsets = [0, 0], sizes = [7, 64], strides = [1, 1]} : vector<8x64xf32> to vector<7x64xf32>
    %c1_59 = arith.constant 1 : index
    %c0_60 = arith.constant 0 : index
    %65 = vector.load %arg15[%c1_59, %c0_60] : memref<8x192xf32, #tpu.memory_space<vmem>>, vector<7x64xf32>
    tpu.vector_store %arg15[%c1_59, %c0_60], %64 {strides = array<i32>} : memref<8x192xf32, #tpu.memory_space<vmem>>, vector<7x64xf32>,
    %66 = vector.extract_strided_slice %60 {offsets = [1, 0], sizes = [7, 64], strides = [1, 1]} : vector<8x64xf32> to vector<7x64xf32>
    %c0_61 = arith.constant 0 : index
    %c128_62 = arith.constant 128 : index
    %67 = vector.load %arg15[%c0_61, %c128_62] : memref<8x192xf32, #tpu.memory_space<vmem>>, vector<7x64xf32>
    tpu.vector_store %arg15[%c0_61, %c128_62], %66 {strides = array<i32>} : memref<8x192xf32, #tpu.memory_space<vmem>>, vector<7x64xf32>,
    %c7_63 = arith.constant 7 : index
    %c128_64 = arith.constant 128 : index
    %68 = vector.load %arg15[%c7_63, %c128_64] : memref<8x192xf32, #tpu.memory_space<vmem>>, vector<1x64xf32>
    tpu.vector_store %arg15[%c7_63, %c128_64], %62 {strides = array<i32>} : memref<8x192xf32, #tpu.memory_space<vmem>>, vector<1x64xf32>,
    %c0_65 = arith.constant 0 : index
    %c0_66 = arith.constant 0 : index
    %69 = vector.load %arg15[%c0_65, %c0_66] : memref<8x192xf32, #tpu.memory_space<vmem>>, vector<8x192xf32>
    %70 = arith.truncf %69 : vector<8x192xf32> to vector<8x192xbf16>
    %c0_67 = arith.constant 0 : index
    %c0_68 = arith.constant 0 : index
    %71 = vector.load %arg8[%c0_67, %c0_68] : memref<192x128xbf16, #tpu.memory_space<vmem>>, vector<192x128xbf16>
    %cst_69 = arith.constant dense<0.000000e+00> : vector<8x128xf32>
    %72 = tpu.matmul %70, %71, %cst_69 {dimension_numbers = #tpu.dot_dimension_numbers<[1], [0], [0], [1], [0, 0, 1, 1], [], []>} : vector<8x192xbf16>, vector<192x128xbf16>, vector<8x128xf32> -> vector<8x128xf32>
    %c0_70 = arith.constant 0 : index
    %c0_71 = arith.constant 0 : index
    %73 = vector.load %arg9[%c0_70, %c0_71] : memref<1x128xf32, #tpu.memory_space<vmem>>, vector<1x128xf32>
    %74 = vector.broadcast %73 : vector<1x128xf32> to vector<8x128xf32>
    %75 = arith.addf %72, %74 : vector<8x128xf32>
    %cst_72 = arith.constant 0.000000e+00 : f32
    %76 = vector.broadcast %cst_72 : f32 to vector<8x128xf32>
    %77 = arith.maximumf %75, %76 : vector<8x128xf32>
    %cst_73 = arith.constant dense<0.000000e+00> : vector<128xf32>
    %78 = vector.multi_reduction <add>, %77, %cst_73 [0] : vector<8x128xf32> to vector<128xf32>
    %79 = vector.shape_cast %78 : vector<128xf32> to vector<1x128xf32>
    %c0_74 = arith.constant 0 : index
    %c0_75 = arith.constant 0 : index
    %80 = vector.load %arg10[%c0_74, %c0_75] : memref<128x10xf32, #tpu.memory_space<vmem>>, vector<128x10xf32>
    %cst_76 = arith.constant dense<0.000000e+00> : vector<1x10xf32>
    %81 = tpu.matmul %79, %80, %cst_76 {dimension_numbers = #tpu.dot_dimension_numbers<[1], [0], [0], [1], [0, 0, 1, 1], [], []>} : vector<1x128xf32>, vector<128x10xf32>, vector<1x10xf32> -> vector<1x10xf32>
    %c0_77 = arith.constant 0 : index
    %c0_78 = arith.constant 0 : index
    %82 = vector.load %arg11[%c0_77, %c0_78] : memref<1x10xf32, #tpu.memory_space<vmem>>, vector<1x10xf32>
    %83 = arith.addf %81, %82 : vector<1x10xf32>
    %c0_79 = arith.constant 0 : index
    %c0_80 = arith.constant 0 : index
    %c0_81 = arith.constant 0 : index
    %84 = vector.load %arg12[%c0_79, %c0_80, %c0_81] : memref<1x1x10xf32, #tpu.memory_space<vmem>>, vector<1x1x10xf32>
    %85 = vector.shape_cast %84 : vector<1x1x10xf32> to vector<1x10xf32>
    %86 = vector.shape_cast %83 : vector<1x10xf32> to vector<1x1x10xf32>
    tpu.vector_store %arg12[%c0_79, %c0_80, %c0_81], %86 {strides = array<i32>} : memref<1x1x10xf32, #tpu.memory_space<vmem>>, vector<1x1x10xf32>,
    return
  }
  func.func @transform_0(%arg0: i32) -> (i32, i32, i32, i32) {
    %c0_i32 = arith.constant 0 : i32
    %c0_i32_0 = arith.constant 0 : i32
    %c0_i32_1 = arith.constant 0 : i32
    %c0_i32_2 = arith.constant 0 : i32
    return %arg0, %c0_i32, %c0_i32_0, %c0_i32_1 : i32, i32, i32, i32
  }
  func.func @transform_1(%arg0: i32) -> (i32, i32) {
    %c0_i32 = arith.constant 0 : i32
    %c0_i32_0 = arith.constant 0 : i32
    %c0_i32_1 = arith.constant 0 : i32
    return %c0_i32, %c0_i32_0 : i32, i32
  }
  func.func @transform_2(%arg0: i32) -> (i32, i32) {
    %c0_i32 = arith.constant 0 : i32
    %c0_i32_0 = arith.constant 0 : i32
    %c0_i32_1 = arith.constant 0 : i32
    return %c0_i32, %c0_i32_0 : i32, i32
  }
  func.func @transform_3(%arg0: i32) -> (i32, i32) {
    %c0_i32 = arith.constant 0 : i32
    %c0_i32_0 = arith.constant 0 : i32
    %c0_i32_1 = arith.constant 0 : i32
    return %c0_i32, %c0_i32_0 : i32, i32
  }
  func.func @transform_4(%arg0: i32) -> (i32, i32) {
    %c0_i32 = arith.constant 0 : i32
    %c0_i32_0 = arith.constant 0 : i32
    %c0_i32_1 = arith.constant 0 : i32
    return %c0_i32, %c0_i32_0 : i32, i32
  }
  func.func @transform_5(%arg0: i32) -> (i32, i32) {
    %c0_i32 = arith.constant 0 : i32
    %c0_i32_0 = arith.constant 0 : i32
    %c0_i32_1 = arith.constant 0 : i32
    return %c0_i32, %c0_i32_0 : i32, i32
  }
  func.func @transform_6(%arg0: i32) -> (i32, i32) {
    %c0_i32 = arith.constant 0 : i32
    %c0_i32_0 = arith.constant 0 : i32
    %c0_i32_1 = arith.constant 0 : i32
    return %c0_i32, %c0_i32_0 : i32, i32
  }
  func.func @transform_7(%arg0: i32) -> (i32, i32) {
    %c0_i32 = arith.constant 0 : i32
    %c0_i32_0 = arith.constant 0 : i32
    %c0_i32_1 = arith.constant 0 : i32
    return %c0_i32, %c0_i32_0 : i32, i32
  }
  func.func @transform_8(%arg0: i32) -> (i32, i32) {
    %c0_i32 = arith.constant 0 : i32
    %c0_i32_0 = arith.constant 0 : i32
    %c0_i32_1 = arith.constant 0 : i32
    return %c0_i32, %c0_i32_0 : i32, i32
  }
  func.func @transform_9(%arg0: i32) -> (i32, i32) {
    %c0_i32 = arith.constant 0 : i32
    %c0_i32_0 = arith.constant 0 : i32
    %c0_i32_1 = arith.constant 0 : i32
    return %c0_i32, %c0_i32_0 : i32, i32
  }
  func.func @transform_10(%arg0: i32) -> (i32, i32) {
    %c0_i32 = arith.constant 0 : i32
    %c0_i32_0 = arith.constant 0 : i32
    %c0_i32_1 = arith.constant 0 : i32
    return %c0_i32, %c0_i32_0 : i32, i32
  }
  func.func @transform_11(%arg0: i32) -> (i32, i32, i32) {
    %c0_i32 = arith.constant 0 : i32
    %c0_i32_0 = arith.constant 0 : i32
    %c0_i32_1 = arith.constant 0 : i32
    return %arg0, %c0_i32, %c0_i32_0 : i32, i32, i32
  }
}

</mosaic_0001>

<llo_original>
// kernel: forward.1
$region0: #{forward.1}
  #allocation0 [shape = 'u32[]', space=smem, size = 0x4, offset = 0x4, fixed_abs, tag = 'smem constant byte address 0x4 - core index']
  #allocation1 [shape = 'u32[144,128]{1,0:T(1,128)}', space=vmem, size = 0x12000, scoped, tag = 'internal scratch']
  #allocation2 [shape = 'f32[16,192]{1,0:T(8,128)}', space=vmem, size = 0x4000, scoped, tag = 'scratch operand']
  #allocation3 [shape = 'f32[8,192]{1,0:T(8,128)}', space=vmem, size = 0x2000, scoped, tag = 'scratch operand']
  #allocation4 [shape = 'f32[8,192]{1,0:T(8,128)}', space=vmem, size = 0x2000, scoped, tag = 'scratch operand']
  %s0 = inlined_call_operand.vmem [shape: f32[2,4,16,16], index: 0, kind: input, shape index: {}]
  %s1 = inlined_call_operand.vmem [shape: bf16[192,128], index: 1, kind: input, shape index: {}]
  %s2 = inlined_call_operand.vmem [shape: f32[1,128], index: 2, kind: input, shape index: {}]
  %s3 = inlined_call_operand.vmem [shape: f32[1,128], index: 3, kind: input, shape index: {}]
  %s4 = inlined_call_operand.hbm [shape: f32[1,128], index: 4, kind: input, shape index: {}]
  %s5 = inlined_call_operand.vmem [shape: bf16[192,64], index: 5, kind: input, shape index: {}]
  %s6 = inlined_call_operand.hbm [shape: f32[1,64], index: 6, kind: input, shape index: {}]
  %s7 = inlined_call_operand.vmem [shape: bf16[192,128], index: 7, kind: input, shape index: {}]
  %s8 = inlined_call_operand.hbm [shape: f32[1,128], index: 8, kind: input, shape index: {}]
  %s9 = inlined_call_operand.vmem [shape: f32[128,10], index: 9, kind: input, shape index: {}]
  %s10 = inlined_call_operand.vmem [shape: f32[1,10], index: 10, kind: input, shape index: {}]
  %s11 = inlined_call_operand.hbm [shape: f32[2,1,10], index: 11, kind: output, shape index: {}]
  %s12 = sld [smem:[#allocation0]]
  $region89: #{forward.1} parent=0
    _
  %s14 = ssub.s32 1, %s12
  %s15 = scalar_select 0, %s14, %s12
  $region1: #{forward.1} parent=0
    #allocation5 [shape = 'u8[512]{0}', space=vmem, size = 0x400, scoped, tag = 'input window, operand 4, single buffered']
    #allocation6 [shape = 's32[2]{0}', space=sflag, size = 0x8, scoped, tag = 'scoped memory for forward.1']
    #allocation7 [shape = 's32[2]{0}', space=sflag, size = 0x8, scoped, tag = 'scoped memory for forward.1']
    #allocation8 [shape = 'u8[512]{0}', space=vmem, size = 0x400, scoped, tag = 'input window, operand 6, single buffered']
    #allocation9 [shape = 's32[1]{0}', space=sflag, size = 0x4, scoped, tag = 'scoped memory for forward.1']
    #allocation10 [shape = 'u8[512]{0}', space=vmem, size = 0x400, scoped, tag = 'input window, operand 8, single buffered']
    #allocation11 [shape = 'u8[1024]{0}', space=vmem, size = 0x400, scoped, tag = 'output window, operand 0']
    %16 = vsyncpa [#allocation6], 0
    %17 = vsyncpa [#allocation9], 0
    %18 = vsyncpa [#allocation7], 0
    %s19 = scalar_lea.sflag [#allocation7], 1
    %20 = vsyncpa %s19, 0
    loop: start=0, step=1, limit=4
    $region2: #{forward.1} parent=1 // loop_pre_header
      _
    $region3: #{forward.1} parent=1 // loop_header
      %s22 = sphi 0, %s26
      %p23 = scmp.ge.s32.totalorder %s22, 4
      %s32 = sphi 0, %s34
      %s35 = sphi 0, %s32
      %s36 = sphi 0, %s35
      %s52 = sphi 0, %s36
      %s56 = sphi 0, %s56
      %s58 = sphi 0, %s56
      %s59 = sphi 0, %s58
      %s73 = sphi 0, %s59
      %s77 = sphi 0, %s77
      %s79 = sphi 0, %s77
      %s80 = sphi 0, %s79
      %s94 = sphi 0, %s80
      %s98 = sphi 0, %s98
      %s100 = sphi 0, %s98
      %s101 = sphi 0, %s100
      %s115 = sphi 0, %s101
      %s119 = sphi 0, %s119
      %s121 = sphi 0, %s119
      %s122 = sphi 0, %s121
      %s136 = sphi 0, %s122
      %s140 = sphi 0, %s140
      %s142 = sphi 0, %s140
      %s143 = sphi 0, %s142
      %s157 = sphi 0, %s143
      %s161 = sphi 0, %s161
      %s163 = sphi 0, %s161
      %s164 = sphi 0, %s163
      %s178 = sphi 0, %s164
      %s182 = sphi 0, %s182
      %s184 = sphi 0, %s182
      %s185 = sphi 0, %s184
      %s199 = sphi 0, %s185
      %s203 = sphi 0, %s203
      %s205 = sphi 0, %s203
      %s206 = sphi 0, %s205
      %s220 = sphi 0, %s206
      %s224 = sphi 0, %s224
      %s226 = sphi 0, %s224
      %s227 = sphi 0, %s226
      %s241 = sphi 0, %s227
      %s245 = sphi 0, %s245
      %s247 = sphi 0, %s245
      %s248 = sphi 0, %s247
      %s262 = sphi 0, %s248
      %s268 = sphi 0, %s270
      %s271 = sphi 0, %s268
      %s272 = sphi 0, %s271
      %s288 = sphi 0, %s272
    $region4: #{forward.1} parent=1 // loop_header_branch
      %25 = sbr.rel (%p23) target = $region8
    $region5: #{forward.1} parent=1 // loop_body
      %s27 = ssub.s32 %s22, 1
      %s28 = ssub.s32 %s22, 2
      %s29 = sadd.s32 %s22, 1
      %s30 = ssub.s32 %s22, %s29
      %p31 = scmp.eq.s32.totalorder %s30, 0
      %s33 = sadd.s32 %s32, 1
      %s34 = scalar_select %p31, %s32, %s33
      %p37 = pneg %p31
      %p38 = scmp.eq.s32.totalorder %s22, 1
      %p39 = por %p37, %p38
      %p40 = scmp.ne.s32.totalorder %s32, %s35
      %p41 = scmp.eq.s32.totalorder %s22, 0
      %p42 = por %p40, %p41
      %p43 = scmp.ne.s32.totalorder %s32, %s35
      %p44 = scmp.eq.s32.totalorder %s27, 1
      %p45 = por %p43, %p44
      %p46 = scmp.ne.s32.totalorder %s35, %s36
      %p47 = scmp.eq.s32.totalorder %s27, 0
      %p48 = por %p46, %p47
      %p49 = scmp.ne.s32.totalorder %s35, %s36
      %p50 = scmp.eq.s32.totalorder %s28, 1
      %p51 = por %p49, %p50
      %p53 = scmp.ne.s32.totalorder %s36, %s52
      %p54 = scmp.eq.s32.totalorder %s28, 0
      %p55 = por %p53, %p54
      %s57 = sadd.s32 %s56, 1
      %p60 = scmp.eq.s32.totalorder %s22, 1
      %p61 = scmp.ne.s32.totalorder %s56, %s58
      %p62 = scmp.eq.s32.totalorder %s22, 0
      %p63 = por %p61, %p62
      %p64 = scmp.ne.s32.totalorder %s56, %s58
      %p65 = scmp.eq.s32.totalorder %s27, 1
      %p66 = por %p64, %p65
      %p67 = scmp.ne.s32.totalorder %s58, %s59
      %p68 = scmp.eq.s32.totalorder %s27, 0
      %p69 = por %p67, %p68
      %p70 = scmp.ne.s32.totalorder %s58, %s59
      %p71 = scmp.eq.s32.totalorder %s28, 1
      %p72 = por %p70, %p71
      %p74 = scmp.ne.s32.totalorder %s59, %s73
      %p75 = scmp.eq.s32.totalorder %s28, 0
      %p76 = por %p74, %p75
      %s78 = sadd.s32 %s77, 1
      %p81 = scmp.eq.s32.totalorder %s22, 1
      %p82 = scmp.ne.s32.totalorder %s77, %s79
      %p83 = scmp.eq.s32.totalorder %s22, 0
      %p84 = por %p82, %p83
      %p85 = scmp.ne.s32.totalorder %s77, %s79
      %p86 = scmp.eq.s32.totalorder %s27, 1
      %p87 = por %p85, %p86
      %p88 = scmp.ne.s32.totalorder %s79, %s80
      %p89 = scmp.eq.s32.totalorder %s27, 0
      %p90 = por %p88, %p89
      %p91 = scmp.ne.s32.totalorder %s79, %s80
      %p92 = scmp.eq.s32.totalorder %s28, 1
      %p93 = por %p91, %p92
      %p95 = scmp.ne.s32.totalorder %s80, %s94
      %p96 = scmp.eq.s32.totalorder %s28, 0
      %p97 = por %p95, %p96
      %s99 = sadd.s32 %s98, 1
      %p102 = scmp.eq.s32.totalorder %s22, 1
      %p103 = scmp.ne.s32.totalorder %s98, %s100
      %p104 = scmp.eq.s32.totalorder %s22, 0
      %p105 = por %p103, %p104
      %p106 = scmp.ne.s32.totalorder %s98, %s100
      %p107 = scmp.eq.s32.totalorder %s27, 1
      %p108 = por %p106, %p107
      %p109 = scmp.ne.s32.totalorder %s100, %s101
      %p110 = scmp.eq.s32.totalorder %s27, 0
      %p111 = por %p109, %p110
      %p112 = scmp.ne.s32.totalorder %s100, %s101
      %p113 = scmp.eq.s32.totalorder %s28, 1
      %p114 = por %p112, %p113
      %p116 = scmp.ne.s32.totalorder %s101, %s115
      %p117 = scmp.eq.s32.totalorder %s28, 0
      %p118 = por %p116, %p117
      %s120 = sadd.s32 %s119, 1
      %p123 = scmp.eq.s32.totalorder %s22, 1
      %p124 = scmp.ne.s32.totalorder %s119, %s121
      %p125 = scmp.eq.s32.totalorder %s22, 0
      %p126 = por %p124, %p125
      %p127 = scmp.ne.s32.totalorder %s119, %s121
      %p128 = scmp.eq.s32.totalorder %s27, 1
      %p129 = por %p127, %p128
      %p130 = scmp.ne.s32.totalorder %s121, %s122
      %p131 = scmp.eq.s32.totalorder %s27, 0
      %p132 = por %p130, %p131
      %p133 = scmp.ne.s32.totalorder %s121, %s122
      %p134 = scmp.eq.s32.totalorder %s28, 1
      %p135 = por %p133, %p134
      %p137 = scmp.ne.s32.totalorder %s122, %s136
      %p138 = scmp.eq.s32.totalorder %s28, 0
      %p139 = por %p137, %p138
      %s141 = sadd.s32 %s140, 1
      %p144 = scmp.eq.s32.totalorder %s22, 1
      %p145 = scmp.ne.s32.totalorder %s140, %s142
      %p146 = scmp.eq.s32.totalorder %s22, 0
      %p147 = por %p145, %p146
      %p148 = scmp.ne.s32.totalorder %s140, %s142
      %p149 = scmp.eq.s32.totalorder %s27, 1
      %p150 = por %p148, %p149
      %p151 = scmp.ne.s32.totalorder %s142, %s143
      %p152 = scmp.eq.s32.totalorder %s27, 0
      %p153 = por %p151, %p152
      %p154 = scmp.ne.s32.totalorder %s142, %s143
      %p155 = scmp.eq.s32.totalorder %s28, 1
      %p156 = por %p154, %p155
      %p158 = scmp.ne.s32.totalorder %s143, %s157
      %p159 = scmp.eq.s32.totalorder %s28, 0
      %p160 = por %p158, %p159
      %s162 = sadd.s32 %s161, 1
      %p165 = scmp.eq.s32.totalorder %s22, 1
      %p166 = scmp.ne.s32.totalorder %s161, %s163
      %p167 = scmp.eq.s32.totalorder %s22, 0
      %p168 = por %p166, %p167
      %p169 = scmp.ne.s32.totalorder %s161, %s163
      %p170 = scmp.eq.s32.totalorder %s27, 1
      %p171 = por %p169, %p170
      %p172 = scmp.ne.s32.totalorder %s163, %s164
      %p173 = scmp.eq.s32.totalorder %s27, 0
      %p174 = por %p172, %p173
      %p175 = scmp.ne.s32.totalorder %s163, %s164
      %p176 = scmp.eq.s32.totalorder %s28, 1
      %p177 = por %p175, %p176
      %p179 = scmp.ne.s32.totalorder %s164, %s178
      %p180 = scmp.eq.s32.totalorder %s28, 0
      %p181 = por %p179, %p180
      %s183 = sadd.s32 %s182, 1
      %p186 = scmp.eq.s32.totalorder %s22, 1
      %p187 = scmp.ne.s32.totalorder %s182, %s184
      %p188 = scmp.eq.s32.totalorder %s22, 0
      %p189 = por %p187, %p188
      %p190 = scmp.ne.s32.totalorder %s182, %s184
      %p191 = scmp.eq.s32.totalorder %s27, 1
      %p192 = por %p190, %p191
      %p193 = scmp.ne.s32.totalorder %s184, %s185
      %p194 = scmp.eq.s32.totalorder %s27, 0
      %p195 = por %p193, %p194
      %p196 = scmp.ne.s32.totalorder %s184, %s185
      %p197 = scmp.eq.s32.totalorder %s28, 1
      %p198 = por %p196, %p197
      %p200 = scmp.ne.s32.totalorder %s185, %s199
      %p201 = scmp.eq.s32.totalorder %s28, 0
      %p202 = por %p200, %p201
      %s204 = sadd.s32 %s203, 1
      %p207 = scmp.eq.s32.totalorder %s22, 1
      %p208 = scmp.ne.s32.totalorder %s203, %s205
      %p209 = scmp.eq.s32.totalorder %s22, 0
      %p210 = por %p208, %p209
      %p211 = scmp.ne.s32.totalorder %s203, %s205
      %p212 = scmp.eq.s32.totalorder %s27, 1
      %p213 = por %p211, %p212
      %p214 = scmp.ne.s32.totalorder %s205, %s206
      %p215 = scmp.eq.s32.totalorder %s27, 0
      %p216 = por %p214, %p215
      %p217 = scmp.ne.s32.totalorder %s205, %s206
      %p218 = scmp.eq.s32.totalorder %s28, 1
      %p219 = por %p217, %p218
      %p221 = scmp.ne.s32.totalorder %s206, %s220
      %p222 = scmp.eq.s32.totalorder %s28, 0
      %p223 = por %p221, %p222
      %s225 = sadd.s32 %s224, 1
      %p228 = scmp.eq.s32.totalorder %s22, 1
      %p229 = scmp.ne.s32.totalorder %s224, %s226
      %p230 = scmp.eq.s32.totalorder %s22, 0
      %p231 = por %p229, %p230
      %p232 = scmp.ne.s32.totalorder %s224, %s226
      %p233 = scmp.eq.s32.totalorder %s27, 1
      %p234 = por %p232, %p233
      %p235 = scmp.ne.s32.totalorder %s226, %s227
      %p236 = scmp.eq.s32.totalorder %s27, 0
      %p237 = por %p235, %p236
      %p238 = scmp.ne.s32.totalorder %s226, %s227
      %p239 = scmp.eq.s32.totalorder %s28, 1
      %p240 = por %p238, %p239
      %p242 = scmp.ne.s32.totalorder %s227, %s241
      %p243 = scmp.eq.s32.totalorder %s28, 0
      %p244 = por %p242, %p243
      %s246 = sadd.s32 %s245, 1
      %p249 = scmp.eq.s32.totalorder %s22, 1
      %p250 = scmp.ne.s32.totalorder %s245, %s247
      %p251 = scmp.eq.s32.totalorder %s22, 0
      %p252 = por %p250, %p251
      %p253 = scmp.ne.s32.totalorder %s245, %s247
      %p254 = scmp.eq.s32.totalorder %s27, 1
      %p255 = por %p253, %p254
      %p256 = scmp.ne.s32.totalorder %s247, %s248
      %p257 = scmp.eq.s32.totalorder %s27, 0
      %p258 = por %p256, %p257
      %p259 = scmp.ne.s32.totalorder %s247, %s248
      %p260 = scmp.eq.s32.totalorder %s28, 1
      %p261 = por %p259, %p260
      %p263 = scmp.ne.s32.totalorder %s248, %s262
      %p264 = scmp.eq.s32.totalorder %s28, 0
      %p265 = por %p263, %p264
      %s266 = ssub.s32 %s22, %s29
      %p267 = scmp.eq.s32.totalorder %s266, 0
      %s269 = sadd.s32 %s268, 1
      %s270 = scalar_select %p267, %s268, %s269
      %p273 = pneg %p267
      %p274 = scmp.eq.s32.totalorder %s22, 1
      %p275 = por %p273, %p274
      %p276 = scmp.ne.s32.totalorder %s268, %s271
      %p277 = scmp.eq.s32.totalorder %s22, 0
      %p278 = por %p276, %p277
      %p279 = scmp.ne.s32.totalorder %s268, %s271
      %p280 = scmp.eq.s32.totalorder %s27, 1
      %p281 = por %p279, %p280
      %p282 = scmp.ne.s32.totalorder %s271, %s272
      %p283 = scmp.eq.s32.totalorder %s27, 0
      %p284 = por %p282, %p283
      %p285 = scmp.ne.s32.totalorder %s271, %s272
      %p286 = scmp.eq.s32.totalorder %s28, 1
      %p287 = por %p285, %p286
      %p289 = scmp.ne.s32.totalorder %s272, %s288
      %p290 = scmp.eq.s32.totalorder %s28, 0
      %p291 = por %p289, %p290
      %p292 = scmp.le.s32.totalorder 1, %s22
      %p293 = scmp.lt.s32.totalorder %s22, 3
      %p294 = pnand %p292, %p293
      %p295 = pneg %p294
      // Predicated region
      $region9: #{forward.1} parent=5 // pred_check
        _
      $region10: #{forward.1} parent=5 // pred_check_branch
        %297 = sbr.rel (%p294) target = $region12
      $region11: #{forward.1} parent=5 // pred_region
        %s298 = ssub.s32 %s22, 1
        // Predicated region
        $region13: #{forward.1} parent=11 // pred_check
          %p299 = pneg %p69
        $region14: #{forward.1} parent=11 // pred_check_branch
          %301 = sbr.rel (%p299) target = $region16
        $region15: #{forward.1} parent=11 // pred_region
          _
        $region16: #{forward.1} parent=11 // pred_fallthru
          _
        // Predicated region
        $region17: #{forward.1} parent=11 // pred_check
          %p302 = pneg %p90
        $region18: #{forward.1} parent=11 // pred_check_branch
          %304 = sbr.rel (%p302) target = $region20
        $region19: #{forward.1} parent=11 // pred_region
          _
        $region20: #{forward.1} parent=11 // pred_fallthru
          _
        // Predicated region
        $region21: #{forward.1} parent=11 // pred_check
          %p305 = pneg %p111
        $region22: #{forward.1} parent=11 // pred_check_branch
          %307 = sbr.rel (%p305) target = $region24
        $region23: #{forward.1} parent=11 // pred_region
          _
        $region24: #{forward.1} parent=11 // pred_fallthru
          _
        // Predicated region
        $region25: #{forward.1} parent=11 // pred_check
          %p308 = pneg %p132
        $region26: #{forward.1} parent=11 // pred_check_branch
          %310 = sbr.rel (%p308) target = $region28
        $region27: #{forward.1} parent=11 // pred_region
          %s312 = ssub.s32 16, 16
          %313 = vsyncadd [#allocation6], %s312
          %s315 = sshll.u32 [#allocation5], 4
          %s316 = int_to_ptr.vmem [resolvable:$true] %s315
          %318 = dma.hbm_to_vmem [thread:$0]  %s4, 16, %s316, [#allocation6]
        $region28: #{forward.1} parent=11 // pred_fallthru
          _
        // Predicated region
        $region29: #{forward.1} parent=11 // pred_check
          %p319 = pneg %p153
        $region30: #{forward.1} parent=11 // pred_check_branch
          %321 = sbr.rel (%p319) target = $region32
        $region31: #{forward.1} parent=11 // pred_region
          _
        $region32: #{forward.1} parent=11 // pred_fallthru
          _
        // Predicated region
        $region33: #{forward.1} parent=11 // pred_check
          %p322 = pneg %p174
        $region34: #{forward.1} parent=11 // pred_check_branch
          %324 = sbr.rel (%p322) target = $region36
        $region35: #{forward.1} parent=11 // pred_region
          %s326 = ssub.s32 16, 16
          %327 = vsyncadd [#allocation9], %s326
          %s329 = sshll.u32 [#allocation8], 4
          %s330 = int_to_ptr.vmem [resolvable:$true] %s329
          %332 = dma.hbm_to_vmem [thread:$0]  %s6, 16, %s330, [#allocation9]
        $region36: #{forward.1} parent=11 // pred_fallthru
          _
        // Predicated region
        $region37: #{forward.1} parent=11 // pred_check
          %p333 = pneg %p195
        $region38: #{forward.1} parent=11 // pred_check_branch
          %335 = sbr.rel (%p333) target = $region40
        $region39: #{forward.1} parent=11 // pred_region
          _
        $region40: #{forward.1} parent=11 // pred_fallthru
          _
        // Predicated region
        $region41: #{forward.1} parent=11 // pred_check
          %p336 = pneg %p216
        $region42: #{forward.1} parent=11 // pred_check_branch
          %338 = sbr.rel (%p336) target = $region44
        $region43: #{forward.1} parent=11 // pred_region
          %s340 = ssub.s32 16, 16
          %341 = vsyncadd [#allocation9], %s340
          %s343 = sshll.u32 [#allocation10], 4
          %s344 = int_to_ptr.vmem [resolvable:$true] %s343
          %346 = dma.hbm_to_vmem [thread:$0]  %s8, 16, %s344, [#allocation9]
        $region44: #{forward.1} parent=11 // pred_fallthru
          _
        // Predicated region
        $region45: #{forward.1} parent=11 // pred_check
          %p347 = pneg %p237
        $region46: #{forward.1} parent=11 // pred_check_branch
          %349 = sbr.rel (%p347) target = $region48
        $region47: #{forward.1} parent=11 // pred_region
          _
        $region48: #{forward.1} parent=11 // pred_fallthru
          _
        // Predicated region
        $region49: #{forward.1} parent=11 // pred_check
          %p350 = pneg %p258
        $region50: #{forward.1} parent=11 // pred_check_branch
          %352 = sbr.rel (%p350) target = $region52
        $region51: #{forward.1} parent=11 // pred_region
          _
        $region52: #{forward.1} parent=11 // pred_fallthru
          _
      $region12: #{forward.1} parent=5 // pred_fallthru
        _
      %p353 = scmp.lt.s32.totalorder %s22, 2
      // Predicated region
      $region53: #{forward.1} parent=5 // pred_check
        %p354 = pneg %p353
      $region54: #{forward.1} parent=5 // pred_check_branch
        %356 = sbr.rel (%p354) target = $region56
      $region55: #{forward.1} parent=5 // pred_region
        // Predicated region
        $region57: #{forward.1} parent=55 // pred_check
          %p357 = pneg %p42
        $region58: #{forward.1} parent=55 // pred_check_branch
          %359 = sbr.rel (%p357) target = $region60
        $region59: #{forward.1} parent=55 // pred_region
          %p360 = scmp.lt.s32.totalorder %s22, 1
          %s361 = scalar_select %p360, %s22, 1
          %s362 = smul.addr %s361, 8
          %s363 = smul.addr %s362, 8
          %s364 = scalar_lea.vmem %s0, %s363
        $region60: #{forward.1} parent=55 // pred_fallthru
          _
      $region56: #{forward.1} parent=5 // pred_fallthru
        _
      %p365 = scmp.le.s32.totalorder 1, %s22
      %p366 = scmp.lt.s32.totalorder %s22, 3
      %p367 = pnand %p365, %p366
      %p368 = pneg %p367
      // Predicated region
      $region61: #{forward.1} parent=5 // pred_check
        _
      $region62: #{forward.1} parent=5 // pred_check_branch
        %370 = sbr.rel (%p367) target = $region64
      $region63: #{forward.1} parent=5 // pred_region
        %s371 = ssub.s32 %s22, 1
        // Predicated region
        $region65: #{forward.1} parent=63 // pred_check
          %p372 = pneg %p132
        $region66: #{forward.1} parent=63 // pred_check_branch
          %374 = sbr.rel (%p372) target = $region68
        $region67: #{forward.1} parent=63 // pred_region
          %375 = dma.done [#allocation6], 16
        $region68: #{forward.1} parent=63 // pred_fallthru
          _
        // Predicated region
        $region69: #{forward.1} parent=63 // pred_check
          %p376 = pneg %p174
        $region70: #{forward.1} parent=63 // pred_check_branch
          %378 = sbr.rel (%p376) target = $region72
        $region71: #{forward.1} parent=63 // pred_region
          %379 = dma.done [#allocation9], 16
        $region72: #{forward.1} parent=63 // pred_fallthru
          _
        // Predicated region
        $region73: #{forward.1} parent=63 // pred_check
          %p380 = pneg %p216
        $region74: #{forward.1} parent=63 // pred_check_branch
          %382 = sbr.rel (%p380) target = $region76
        $region75: #{forward.1} parent=63 // pred_region
          %383 = dma.done [#allocation9], 16
        $region76: #{forward.1} parent=63 // pred_fallthru
          _
        %p384 = scmp.lt.s32.totalorder %s27, 1
        %s385 = scalar_select %p384, %s27, 1
        %s386 = smul.addr %s385, 8
        %s387 = smul.addr %s386, 8
        %s388 = scalar_lea.vmem %s0, %s387
        %p389 = pneg %p48
        %p390 = pneg %p45
        %p391 = pneg %p69
        %p392 = pneg %p66
        %p393 = pneg %p90
        %p394 = pneg %p87
        %p395 = pneg %p111
        %p396 = pneg %p108
        %p397 = pneg %p132
        %p398 = pneg %p129
        %p399 = pneg %p153
        %p400 = pneg %p150
        %p401 = pneg %p174
        %p402 = pneg %p171
        %p403 = pneg %p195
        %p404 = pneg %p192
        %p405 = pneg %p216
        %p406 = pneg %p213
        %p407 = pneg %p237
        %p408 = pneg %p234
        %p409 = pneg %p258
        %p410 = pneg %p255
        %p411 = pneg %p284
        %p412 = pneg %p281
        %s413 = sand.u32 %s271, 1
        %s414 = scalar_lea.sflag [#allocation7], %s413
        %s415 = sand.u32 %s271, 1
        %s416 = scalar_lea.vmem [#allocation11], %s415
        %p417 = scmp.lt.s32.totalorder %s27, 1
        %s418 = scalar_select %p417, %s27, 1
        %s419 = smul.addr %s418, 8
        %s420 = smul.addr %s419, 8
        %s421 = scalar_lea.vmem %s0, %s420
        %v423 = vld [vmem:[%s421] sm:$0xff]
        %v424 = vld [vmem:[%s421 + $0x8] sm:$0xff]
        %427 = vrot.lane.b32.xlu0 %v423, 64
        %v428 = vpop.permute.xlu0 %427
        %429 = vrot.lane.b32.xlu0 %v424, 64
        %v430 = vpop.permute.xlu0 %429
        %vm433 = vcmask 654848
        %434 = vst.msk [vmem:[#allocation2] sm:$0xff] %vm433, %v428
        %435 = vst.msk [vmem:[#allocation2 + $0x10] sm:$0xff] %vm433, %v430
        %s436 = scalar_lea.vmem %s421, 16
        %v437 = vld [vmem:[%s436] sm:$0xff]
        %v438 = vld [vmem:[%s436 + $0x8] sm:$0xff]
        %441 = vrot.lane.b32.xlu0 %v437, 80
        %v442 = vpop.permute.xlu0 %441
        %443 = vrot.lane.b32.xlu0 %v438, 80
        %v444 = vpop.permute.xlu0 %443
        %vm447 = vcmask 786048
        %448 = vst.msk [vmem:[#allocation2] sm:$0xff] %vm447, %v442
        %449 = vst.msk [vmem:[#allocation2 + $0x10] sm:$0xff] %vm447, %v444
        %s450 = scalar_lea.vmem %s421, 32
        %v451 = vld [vmem:[%s450] sm:$0xff]
        %v452 = vld [vmem:[%s450 + $0x8] sm:$0xff]
        %455 = vrot.lane.b32.xlu0 %v451, 96
        %v456 = vpop.permute.xlu0 %455
        %457 = vrot.lane.b32.xlu0 %v452, 96
        %v458 = vpop.permute.xlu0 %457
        %vm461 = vcmask 917248
        %462 = vst.msk [vmem:[#allocation2] sm:$0xff] %vm461, %v456
        %463 = vst.msk [vmem:[#allocation2 + $0x10] sm:$0xff] %vm461, %v458
        %s464 = scalar_lea.vmem %s421, 48
        %v465 = vld [vmem:[%s464] sm:$0xff]
        %v466 = vld [vmem:[%s464 + $0x8] sm:$0xff]
        %469 = vrot.lane.b32.xlu0 %v465, 112
        %v470 = vpop.permute.xlu0 %469
        %471 = vrot.lane.b32.xlu0 %v466, 112
        %v472 = vpop.permute.xlu0 %471
        %vm475 = vcmask 1048448
        %476 = vst.msk [vmem:[#allocation2] sm:$0xff] %vm475, %v470
        %477 = vst.msk [vmem:[#allocation2 + $0x10] sm:$0xff] %vm475, %v472
        %v478 = vld [vmem:[#allocation2] sm:$0xff]
        %v479 = vld [vmem:[#allocation2 + $0x10] sm:$0xff]
        %vm480 = vcmask 516096
        %481 = vst.msk [vmem:[#allocation2] sm:$0x1] %vm480, 0.0
        %vm484 = vcmask 1040384
        %v485 = vrot.slane %v478, 7
        %v486 = vrot.slane %v479, 7
        %v487 = vsel %vm484, %v485, %v486
        %488 = vrot.lane.b32.xlu0 %v485, 64
        %v489 = vpop.permute.xlu0 %488
        %490 = vrot.lane.b32.xlu0 %v487, 64
        %v491 = vpop.permute.xlu0 %490
        %vm494 = vcmask 523265
        %495 = vst.msk [vmem:[#allocation2] sm:$0xfe] %vm494, %v489
        %vm496 = vcmask 523264
        %497 = vst.msk [vmem:[#allocation2 + $0x10] sm:$0xff] %vm496, %v491
        %vm498 = vcmask 1046528
        %v499 = vrot.slane %v478, 1
        %v500 = vrot.slane %v479, 1
        %v501 = vsel %vm498, %v499, %v500
        %502 = vrot.lane.b32.xlu0 %v501, 64
        %v503 = vpop.permute.xlu0 %502
        %504 = vrot.lane.b32.xlu0 %v500, 64
        %v505 = vpop.permute.xlu0 %504
        %508 = vst.msk [vmem:[#allocation2 + $0x8] sm:$0xff] %vm496, %v503
        %vm509 = vcmask 522240
        %510 = vst.msk [vmem:[#allocation2 + $0x18] sm:$0x7f] %vm509, %v505
        %511 = vst.msk [vmem:[#allocation2 + $0x1f] sm:$0x1] %vm480, 0.0
        %v512 = vld [vmem:[#allocation2] sm:$0xff]
        %v513 = vld [vmem:[#allocation2 + $0x8] sm:$0xff]
        %v514 = vld [vmem:[#allocation2 + $0x10] sm:$0xff]
        %v515 = vld [vmem:[#allocation2 + $0x18] sm:$0xff]
        %v516 = vpack.c.bf16 %v514, %v512
        %v517 = vpack.c.bf16 %v515, %v513
        %v518 = vld [vmem:[%s1] sm:$0xf]
        %v519 = vld [vmem:[%s1 + $0x4] sm:$0xf]
        %v520 = vld [vmem:[%s1 + $0x8] sm:$0xf]
        %v521 = vld [vmem:[%s1 + $0xc] sm:$0xf]
        %v522 = vld [vmem:[%s1 + $0x10] sm:$0xf]
        %v523 = vld [vmem:[%s1 + $0x14] sm:$0xf]
        %v524 = vld [vmem:[%s1 + $0x18] sm:$0xf]
        %v525 = vld [vmem:[%s1 + $0x1c] sm:$0xf]
        %v526 = vld [vmem:[%s1 + $0x20] sm:$0xf]
        %v527 = vld [vmem:[%s1 + $0x24] sm:$0xf]
        %v528 = vld [vmem:[%s1 + $0x28] sm:$0xf]
        %v529 = vld [vmem:[%s1 + $0x2c] sm:$0xf]
        %v530 = vld [vmem:[%s1 + $0x30] sm:$0xf]
        %v531 = vld [vmem:[%s1 + $0x34] sm:$0xf]
        %v532 = vld [vmem:[%s1 + $0x38] sm:$0xf]
        %v533 = vld [vmem:[%s1 + $0x3c] sm:$0xf]
        %v534 = vld [vmem:[%s1 + $0x40] sm:$0xf]
        %v535 = vld [vmem:[%s1 + $0x44] sm:$0xf]
        %v536 = vld [vmem:[%s1 + $0x48] sm:$0xf]
        %v537 = vld [vmem:[%s1 + $0x4c] sm:$0xf]
        %v538 = vld [vmem:[%s1 + $0x50] sm:$0xf]
        %v539 = vld [vmem:[%s1 + $0x54] sm:$0xf]
        %v540 = vld [vmem:[%s1 + $0x58] sm:$0xf]
        %v541 = vld [vmem:[%s1 + $0x5c] sm:$0xf]
        %v542 = vld [vmem:[%s2] sm:$0x1]
        %v544 = vlaneseq
        %v545 = vshrl.u32 %v544, 7
        %v546 = vsub.s32 0, %v545
        %v547 = vrot.slane %v542, %v546
        %v573 = vunpack.c.l.b16 %v518
        %v574 = vunpack.c.l.b16 %v519
        %v575 = vunpack.c.l.b16 %v520
        %v576 = vunpack.c.l.b16 %v521
        %v577 = vunpack.c.l.b16 %v522
        %v578 = vunpack.c.l.b16 %v523
        %v579 = vunpack.c.l.b16 %v524
        %v580 = vunpack.c.l.b16 %v525
        %v581 = vunpack.c.l.b16 %v526
        %v582 = vunpack.c.l.b16 %v527
        %v583 = vunpack.c.l.b16 %v528
        %v584 = vunpack.c.l.b16 %v529
        %v585 = vunpack.c.l.b16 %v530
        %v586 = vunpack.c.l.b16 %v531
        %v587 = vunpack.c.l.b16 %v532
        %v588 = vunpack.c.l.b16 %v533
        %v589 = vunpack.c.l.b16 %v534
        %v590 = vunpack.c.l.b16 %v535
        %v591 = vunpack.c.l.b16 %v536
        %v592 = vunpack.c.l.b16 %v537
        %v593 = vunpack.c.l.b16 %v538
        %v594 = vunpack.c.l.b16 %v539
        %v595 = vunpack.c.l.b16 %v540
        %v596 = vunpack.c.l.b16 %v541
        %v597 = vpack.c.b16 %v574, %v573
        %v598 = vpack.c.b16 %v576, %v575
        %v599 = vpack.c.b16 %v578, %v577
        %v600 = vpack.c.b16 %v580, %v579
        %v601 = vpack.c.b16 %v582, %v581
        %v602 = vpack.c.b16 %v584, %v583
        %v603 = vpack.c.b16 %v586, %v585
        %v604 = vpack.c.b16 %v588, %v587
        %v605 = vpack.c.b16 %v590, %v589
        %v606 = vpack.c.b16 %v592, %v591
        %v607 = vpack.c.b16 %v594, %v593
        %v608 = vpack.c.b16 %v596, %v595
        %v622 = vsel %vm496, %v517, 0
        %624 = vmatprep.subr.bf16.mxu0 0
        %625 = vmatpush1.bf16.msra.mxu0 %v597
        %626 = vmatprep.subr.bf16.mxu0 0
        %627 = vmatpush1.bf16.msra.mxu0 %v598
        %628 = vmatprep.subr.bf16.mxu0 0
        %629 = vmatpush1.bf16.msra.mxu0 %v599
        %630 = vmatprep.subr.bf16.mxu0 0
        %631 = vmatpush1.bf16.msra.mxu0 %v600
        %632 = vmatprep.subr.bf16.mxu0 0
        %633 = vmatpush1.bf16.msra.mxu0 %v601
        %634 = vmatprep.subr.bf16.mxu0 0
        %635 = vmatpush1.bf16.msra.mxu0 %v602
        %636 = vmatprep.subr.bf16.mxu0 0
        %637 = vmatpush1.bf16.msra.mxu0 %v603
        %638 = vmatprep.subr.bf16.mxu0 0
        %639 = vmatpush1.bf16.msra.mxu0 %v604
        %640 = vmatprep.subr.bf16.mxu0 0
        %641 = vmatpush1.bf16.msra.mxu0 %v605
        %642 = vmatprep.subr.bf16.mxu0 0
        %643 = vmatpush1.bf16.msra.mxu0 %v606
        %644 = vmatprep.subr.bf16.mxu0 0
        %645 = vmatpush1.bf16.msra.mxu0 %v607
        %646 = vmatprep.subr.bf16.mxu0 0
        %647 = vmatpush1.bf16.msra.mxu0 %v608
        %648 = vmatprep.subr.bf16.mxu0 0
        %649 = vmatpush1.bf16.msra.mxu0 0
        %650 = vmatprep.subr.bf16.mxu0 0
        %651 = vmatpush1.bf16.msra.mxu0 0
        %652 = vmatprep.subr.bf16.mxu0 0
        %653 = vmatpush1.bf16.msra.mxu0 0
        %654 = vmatprep.subr.bf16.mxu0 0
        %655 = vmatpush1.bf16.msra.mxu0 0
        %656 = vmatprep.mubr.bf16.mxu0 %v622
        %657 = vmatmul.mubr.bf16.gmra.mrb[0].mxu0 %v516
        %v658 = vpop.f32.mrb[0].mxu0
        %v659 = vadd.f32 %v547, %v658
        %v660 = vpop.f32.mrb[0].mxu0
        %v661 = vpop.f32.mrb[0].mxu0
        %v662 = vadd.f32 %v547, %v661
        %v663 = vpop.f32.mrb[0].mxu0
        %664 = vdwg.mxu0
        %v665 = vld [vmem:[%s3] sm:$0x1]
        %v667 = vlaneseq
        %v668 = vshrl.u32 %v667, 7
        %v669 = vsub.s32 0, %v668
        %v670 = vrot.slane %v665, %v669
        %v672 = vmul.f32 %v659, %v670
        %v673 = vmul.f32 %v662, %v670
        %v674 = vld [vmem:[#allocation5] sm:$0x1]
        %v676 = vlaneseq
        %v677 = vshrl.u32 %v676, 7
        %v678 = vsub.s32 0, %v677
        %v679 = vrot.slane %v674, %v678
        %v681 = vadd.f32 %v672, %v679
        %v682 = vadd.f32 %v673, %v679
        %v683 = vmax.f32 %v681, 0.0
        %v684 = vmax.f32 %v682, 0.0
        %v687 = vcombine.high %v683, %v683
        %v689 = vunpack.c.l.s4 1983009808
        %v690 = vunpack.c.0.s8 %v689
        %v691 = vlaneseq
        %v692 = vshrl.u32 %v691, 7
        %v693 = vsub.s32 %v690, %v692
        %v694 = vrot.slane %v683, %v693
        %v696 = vunpack.c.l.s4 1983009808
        %v697 = vunpack.c.0.s8 %v696
        %v698 = vlaneseq
        %v699 = vshrl.u32 %v698, 7
        %v700 = vsub.s32 %v697, %v699
        %v701 = vrot.slane %v687, %v700
        %v702 = vcombine.high %v694, %v694
        %v703 = vcombine.high %v701, %v701
        %v704 = vcombine.high %v684, %v684
        %v706 = vunpack.c.l.s4 1983009808
        %v707 = vunpack.c.0.s8 %v706
        %v708 = vlaneseq
        %v709 = vshrl.u32 %v708, 7
        %v710 = vsub.s32 %v707, %v709
        %v711 = vrot.slane %v684, %v710
        %v713 = vunpack.c.l.s4 1983009808
        %v714 = vunpack.c.0.s8 %v713
        %v715 = vlaneseq
        %v716 = vshrl.u32 %v715, 7
        %v717 = vsub.s32 %v714, %v716
        %v718 = vrot.slane %v704, %v717
        %v719 = vcombine.high %v711, %v711
        %v720 = vcombine.high %v718, %v718
        %v729 = vrot.slane %v694, 7
        %v730 = vrot.slane %v729, 2
        %v731 = vrot.slane %v702, 7
        %v732 = vrot.slane %v731, 2
        %v733 = vrot.slane %v701, 7
        %v734 = vrot.slane %v733, 2
        %v735 = vrot.slane %v703, 7
        %v736 = vrot.slane %v735, 2
        %v737 = vrot.slane %v711, 7
        %v738 = vrot.slane %v737, 2
        %v739 = vrot.slane %v719, 7
        %v740 = vrot.slane %v739, 2
        %v741 = vrot.slane %v718, 7
        %v742 = vrot.slane %v741, 2
        %v743 = vrot.slane %v720, 7
        %v744 = vrot.slane %v743, 2
        %v753 = vmax.f32 %v694, %v730
        %v754 = vmax.f32 %v702, %v732
        %v755 = vmax.f32 %v701, %v734
        %v756 = vmax.f32 %v703, %v736
        %v757 = vmax.f32 %v711, %v738
        %v758 = vmax.f32 %v719, %v740
        %v759 = vmax.f32 %v718, %v742
        %v760 = vmax.f32 %v720, %v744
        %769 = vrot.lane.b32.xlu0 %v753, 64
        %v770 = vpop.permute.xlu0 %769
        %771 = vrot.lane.b32.xlu0 %v754, 64
        %v772 = vpop.permute.xlu0 %771
        %773 = vrot.lane.b32.xlu0 %v755, 64
        %v774 = vpop.permute.xlu0 %773
        %775 = vrot.lane.b32.xlu0 %v756, 64
        %v776 = vpop.permute.xlu0 %775
        %777 = vrot.lane.b32.xlu0 %v757, 64
        %v778 = vpop.permute.xlu0 %777
        %779 = vrot.lane.b32.xlu0 %v758, 64
        %v780 = vpop.permute.xlu0 %779
        %781 = vrot.lane.b32.xlu0 %v759, 64
        %v782 = vpop.permute.xlu0 %781
        %783 = vrot.lane.b32.xlu0 %v760, 64
        %v784 = vpop.permute.xlu0 %783
        %v793 = vmax.f32 %v753, %v770
        %v794 = vmax.f32 %v754, %v772
        %v795 = vmax.f32 %v755, %v774
        %v796 = vmax.f32 %v756, %v776
        %v797 = vmax.f32 %v757, %v778
        %v798 = vmax.f32 %v758, %v780
        %v799 = vmax.f32 %v759, %v782
        %v800 = vmax.f32 %v760, %v784
        %v809 = vlaneseq
        %v810 = vshrl.u32 %v809, 7
        %v811 = vsub.s32 0, %v810
        %v812 = vrot.slane %v793, %v811
        %v813 = vlaneseq
        %v814 = vshrl.u32 %v813, 7
        %v815 = vsub.s32 0, %v814
        %v816 = vrot.slane %v794, %v815
        %v817 = vlaneseq
        %v818 = vshrl.u32 %v817, 7
        %v819 = vsub.s32 0, %v818
        %v820 = vrot.slane %v795, %v819
        %v821 = vlaneseq
        %v822 = vshrl.u32 %v821, 7
        %v823 = vsub.s32 0, %v822
        %v824 = vrot.slane %v796, %v823
        %v825 = vlaneseq
        %v826 = vshrl.u32 %v825, 7
        %v827 = vsub.s32 0, %v826
        %v828 = vrot.slane %v797, %v827
        %v829 = vlaneseq
        %v830 = vshrl.u32 %v829, 7
        %v831 = vsub.s32 0, %v830
        %v832 = vrot.slane %v798, %v831
        %v833 = vlaneseq
        %v834 = vshrl.u32 %v833, 7
        %v835 = vsub.s32 0, %v834
        %v836 = vrot.slane %v799, %v835
        %v837 = vlaneseq
        %v838 = vshrl.u32 %v837, 7
        %v839 = vsub.s32 0, %v838
        %v840 = vrot.slane %v800, %v839
        %vm841 = vcmask 1041409
        %v842 = vsel %vm841, %v816, %v812
        %vm843 = vcmask 1042434
        %v844 = vsel %vm843, %v820, %v842
        %vm845 = vcmask 1043459
        %v846 = vsel %vm845, %v824, %v844
        %vm847 = vcmask 1044484
        %v848 = vsel %vm847, %v828, %v846
        %vm849 = vcmask 1045509
        %v850 = vsel %vm849, %v832, %v848
        %vm851 = vcmask 1046534
        %v852 = vsel %vm851, %v836, %v850
        %vm853 = vcmask 1047559
        %v854 = vsel %vm853, %v840, %v852
        %855 = vrot.lane.b32.xlu0 %v854, 64
        %v856 = vpop.permute.xlu0 %855
        %vm858 = vcmask 1048064
        %859 = vst.msk [vmem:[#allocation3] sm:$0xff] %vm858, %v856
        %860 = vst.msk [vmem:[#allocation3] sm:$0x1] %vm480, 0.0
        %v861 = vsel %vm843, %v816, %v812
        %v862 = vsel %vm845, %v820, %v861
        %v863 = vsel %vm847, %v824, %v862
        %v864 = vsel %vm849, %v828, %v863
        %v865 = vsel %vm851, %v832, %v864
        %v866 = vsel %vm853, %v836, %v865
        %868 = vst.msk [vmem:[#allocation3] sm:$0xfe] %vm494, %v866
        %v869 = vsel %vm841, %v820, %v816
        %v870 = vsel %vm843, %v824, %v869
        %v871 = vsel %vm845, %v828, %v870
        %v872 = vsel %vm847, %v832, %v871
        %v873 = vsel %vm849, %v836, %v872
        %v874 = vsel %vm851, %v840, %v873
        %876 = vst.msk [vmem:[#allocation3 + $0x8] sm:$0x7f] %vm509, %v874
        %877 = vst.msk [vmem:[#allocation3 + $0xf] sm:$0x1] %vm480, 0.0
        %v878 = vld [vmem:[#allocation3] sm:$0xff]
        %v879 = vld [vmem:[#allocation3 + $0x8] sm:$0xff]
        %v880 = vpack.c.bf16 %v878, %v878
        %v881 = vpack.c.bf16 %v879, %v879
        %v882 = vld [vmem:[%s5] sm:$0xf]
        %v883 = vld [vmem:[%s5 + $0x4] sm:$0xf]
        %v884 = vld [vmem:[%s5 + $0x8] sm:$0xf]
        %v885 = vld [vmem:[%s5 + $0xc] sm:$0xf]
        %v886 = vld [vmem:[%s5 + $0x10] sm:$0xf]
        %v887 = vld [vmem:[%s5 + $0x14] sm:$0xf]
        %v888 = vld [vmem:[%s5 + $0x18] sm:$0xf]
        %v889 = vld [vmem:[%s5 + $0x1c] sm:$0xf]
        %v890 = vld [vmem:[%s5 + $0x20] sm:$0xf]
        %v891 = vld [vmem:[%s5 + $0x24] sm:$0xf]
        %v892 = vld [vmem:[%s5 + $0x28] sm:$0xf]
        %v893 = vld [vmem:[%s5 + $0x2c] sm:$0xf]
        %v894 = vld [vmem:[%s5 + $0x30] sm:$0xf]
        %v895 = vld [vmem:[%s5 + $0x34] sm:$0xf]
        %v896 = vld [vmem:[%s5 + $0x38] sm:$0xf]
        %v897 = vld [vmem:[%s5 + $0x3c] sm:$0xf]
        %v898 = vld [vmem:[%s5 + $0x40] sm:$0xf]
        %v899 = vld [vmem:[%s5 + $0x44] sm:$0xf]
        %v900 = vld [vmem:[%s5 + $0x48] sm:$0xf]
        %v901 = vld [vmem:[%s5 + $0x4c] sm:$0xf]
        %v902 = vld [vmem:[%s5 + $0x50] sm:$0xf]
        %v903 = vld [vmem:[%s5 + $0x54] sm:$0xf]
        %v904 = vld [vmem:[%s5 + $0x58] sm:$0xf]
        %v905 = vld [vmem:[%s5 + $0x5c] sm:$0xf]
        %v906 = vld [vmem:[#allocation8] sm:$0x1]
        %v908 = vlaneseq
        %v909 = vshrl.u32 %v908, 7
        %v910 = vsub.s32 0, %v909
        %v911 = vrot.slane %v906, %v910
        %v937 = vunpack.c.l.b16 %v882
        %v938 = vunpack.c.l.b16 %v883
        %v939 = vunpack.c.l.b16 %v884
        %v940 = vunpack.c.l.b16 %v885
        %v941 = vunpack.c.l.b16 %v886
        %v942 = vunpack.c.l.b16 %v887
        %v943 = vunpack.c.l.b16 %v888
        %v944 = vunpack.c.l.b16 %v889
        %v945 = vunpack.c.l.b16 %v890
        %v946 = vunpack.c.l.b16 %v891
        %v947 = vunpack.c.l.b16 %v892
        %v948 = vunpack.c.l.b16 %v893
        %v949 = vunpack.c.l.b16 %v894
        %v950 = vunpack.c.l.b16 %v895
        %v951 = vunpack.c.l.b16 %v896
        %v952 = vunpack.c.l.b16 %v897
        %v953 = vunpack.c.l.b16 %v898
        %v954 = vunpack.c.l.b16 %v899
        %v955 = vunpack.c.l.b16 %v900
        %v956 = vunpack.c.l.b16 %v901
        %v957 = vunpack.c.l.b16 %v902
        %v958 = vunpack.c.l.b16 %v903
        %v959 = vunpack.c.l.b16 %v904
        %v960 = vunpack.c.l.b16 %v905
        %v961 = vpack.c.b16 %v938, %v937
        %v962 = vpack.c.b16 %v940, %v939
        %v963 = vpack.c.b16 %v942, %v941
        %v964 = vpack.c.b16 %v944, %v943
        %v965 = vpack.c.b16 %v946, %v945
        %v966 = vpack.c.b16 %v948, %v947
        %v967 = vpack.c.b16 %v950, %v949
        %v968 = vpack.c.b16 %v952, %v951
        %v969 = vpack.c.b16 %v954, %v953
        %v970 = vpack.c.b16 %v956, %v955
        %v971 = vpack.c.b16 %v958, %v957
        %v972 = vpack.c.b16 %v960, %v959
        %v986 = vsel %vm496, %v881, 0
        %988 = vmatprep.subr.bf16.mxu0 0
        %989 = vmatpush1.bf16.msra.mxu0 %v961
        %990 = vmatprep.subr.bf16.mxu0 0
        %991 = vmatpush1.bf16.msra.mxu0 %v962
        %992 = vmatprep.subr.bf16.mxu0 0
        %993 = vmatpush1.bf16.msra.mxu0 %v963
        %994 = vmatprep.subr.bf16.mxu0 0
        %995 = vmatpush1.bf16.msra.mxu0 %v964
        %996 = vmatprep.subr.bf16.mxu0 0
        %997 = vmatpush1.bf16.msra.mxu0 %v965
        %998 = vmatprep.subr.bf16.mxu0 0
        %999 = vmatpush1.bf16.msra.mxu0 %v966
        %1000 = vmatprep.subr.bf16.mxu0 0
        %1001 = vmatpush1.bf16.msra.mxu0 %v967
        %1002 = vmatprep.subr.bf16.mxu0 0
        %1003 = vmatpush1.bf16.msra.mxu0 %v968
        %1004 = vmatprep.subr.bf16.mxu0 0
        %1005 = vmatpush1.bf16.msra.mxu0 %v969
        %1006 = vmatprep.subr.bf16.mxu0 0
        %1007 = vmatpush1.bf16.msra.mxu0 %v970
        %1008 = vmatprep.subr.bf16.mxu0 0
        %1009 = vmatpush1.bf16.msra.mxu0 %v971
        %1010 = vmatprep.subr.bf16.mxu0 0
        %1011 = vmatpush1.bf16.msra.mxu0 %v972
        %1012 = vmatprep.subr.bf16.mxu0 0
        %1013 = vmatpush1.bf16.msra.mxu0 0
        %1014 = vmatprep.subr.bf16.mxu0 0
        %1015 = vmatpush1.bf16.msra.mxu0 0
        %1016 = vmatprep.subr.bf16.mxu0 0
        %1017 = vmatpush1.bf16.msra.mxu0 0
        %1018 = vmatprep.subr.bf16.mxu0 0
        %1019 = vmatpush1.bf16.msra.mxu0 0
        %1020 = vmatprep.mubr.bf16.mxu0 %v986
        %1021 = vmatmul.mubr.bf16.gmra.mrb[0].mxu0 %v880
        %v1022 = vpop.f32.mrb[0].mxu0
        %v1023 = vadd.f32 %v911, %v1022
        %v1024 = vpop.f32.mrb[0].mxu0
        %v1025 = vpop.f32.mrb[0].mxu0
        %v1026 = vpop.f32.mrb[0].mxu0
        %1027 = vdwg.mxu0
        %v1028 = vmax.f32 %v1023, 0.0
        %1030 = vrot.lane.b32.xlu0 %v1028, 64
        %v1031 = vpop.permute.xlu0 %1030
        %1033 = vst.msk [vmem:[#allocation4] sm:$0xff] %vm858, %v1031
        %1034 = vst.msk [vmem:[#allocation4] sm:$0x1] %vm480, 0.0
        %v1035 = vrot.slane %v1028, 7
        %1037 = vst.msk [vmem:[#allocation4] sm:$0xfe] %vm494, %v1035
        %v1038 = vrot.slane %v1028, 1
        %1040 = vst.msk [vmem:[#allocation4 + $0x8] sm:$0x7f] %vm509, %v1038
        %1041 = vst.msk [vmem:[#allocation4 + $0xf] sm:$0x1] %vm480, 0.0
        %v1042 = vld [vmem:[#allocation4] sm:$0xff]
        %v1043 = vld [vmem:[#allocation4 + $0x8] sm:$0xff]
        %v1044 = vpack.c.bf16 %v1042, %v1042
        %v1045 = vpack.c.bf16 %v1043, %v1043
        %v1046 = vld [vmem:[%s7] sm:$0xf]
        %v1047 = vld [vmem:[%s7 + $0x4] sm:$0xf]
        %v1048 = vld [vmem:[%s7 + $0x8] sm:$0xf]
        %v1049 = vld [vmem:[%s7 + $0xc] sm:$0xf]
        %v1050 = vld [vmem:[%s7 + $0x10] sm:$0xf]
        %v1051 = vld [vmem:[%s7 + $0x14] sm:$0xf]
        %v1052 = vld [vmem:[%s7 + $0x18] sm:$0xf]
        %v1053 = vld [vmem:[%s7 + $0x1c] sm:$0xf]
        %v1054 = vld [vmem:[%s7 + $0x20] sm:$0xf]
        %v1055 = vld [vmem:[%s7 + $0x24] sm:$0xf]
        %v1056 = vld [vmem:[%s7 + $0x28] sm:$0xf]
        %v1057 = vld [vmem:[%s7 + $0x2c] sm:$0xf]
        %v1058 = vld [vmem:[%s7 + $0x30] sm:$0xf]
        %v1059 = vld [vmem:[%s7 + $0x34] sm:$0xf]
        %v1060 = vld [vmem:[%s7 + $0x38] sm:$0xf]
        %v1061 = vld [vmem:[%s7 + $0x3c] sm:$0xf]
        %v1062 = vld [vmem:[%s7 + $0x40] sm:$0xf]
        %v1063 = vld [vmem:[%s7 + $0x44] sm:$0xf]
        %v1064 = vld [vmem:[%s7 + $0x48] sm:$0xf]
        %v1065 = vld [vmem:[%s7 + $0x4c] sm:$0xf]
        %v1066 = vld [vmem:[%s7 + $0x50] sm:$0xf]
        %v1067 = vld [vmem:[%s7 + $0x54] sm:$0xf]
        %v1068 = vld [vmem:[%s7 + $0x58] sm:$0xf]
        %v1069 = vld [vmem:[%s7 + $0x5c] sm:$0xf]
        %v1070 = vld [vmem:[#allocation10] sm:$0x1]
        %v1072 = vlaneseq
        %v1073 = vshrl.u32 %v1072, 7
        %v1074 = vsub.s32 0, %v1073
        %v1075 = vrot.slane %v1070, %v1074
        %v1101 = vunpack.c.l.b16 %v1046
        %v1102 = vunpack.c.l.b16 %v1047
        %v1103 = vunpack.c.l.b16 %v1048
        %v1104 = vunpack.c.l.b16 %v1049
        %v1105 = vunpack.c.l.b16 %v1050
        %v1106 = vunpack.c.l.b16 %v1051
        %v1107 = vunpack.c.l.b16 %v1052
        %v1108 = vunpack.c.l.b16 %v1053
        %v1109 = vunpack.c.l.b16 %v1054
        %v1110 = vunpack.c.l.b16 %v1055
        %v1111 = vunpack.c.l.b16 %v1056
        %v1112 = vunpack.c.l.b16 %v1057
        %v1113 = vunpack.c.l.b16 %v1058
        %v1114 = vunpack.c.l.b16 %v1059
        %v1115 = vunpack.c.l.b16 %v1060
        %v1116 = vunpack.c.l.b16 %v1061
        %v1117 = vunpack.c.l.b16 %v1062
        %v1118 = vunpack.c.l.b16 %v1063
        %v1119 = vunpack.c.l.b16 %v1064
        %v1120 = vunpack.c.l.b16 %v1065
        %v1121 = vunpack.c.l.b16 %v1066
        %v1122 = vunpack.c.l.b16 %v1067
        %v1123 = vunpack.c.l.b16 %v1068
        %v1124 = vunpack.c.l.b16 %v1069
        %v1125 = vpack.c.b16 %v1102, %v1101
        %v1126 = vpack.c.b16 %v1104, %v1103
        %v1127 = vpack.c.b16 %v1106, %v1105
        %v1128 = vpack.c.b16 %v1108, %v1107
        %v1129 = vpack.c.b16 %v1110, %v1109
        %v1130 = vpack.c.b16 %v1112, %v1111
        %v1131 = vpack.c.b16 %v1114, %v1113
        %v1132 = vpack.c.b16 %v1116, %v1115
        %v1133 = vpack.c.b16 %v1118, %v1117
        %v1134 = vpack.c.b16 %v1120, %v1119
        %v1135 = vpack.c.b16 %v1122, %v1121
        %v1136 = vpack.c.b16 %v1124, %v1123
        %v1150 = vsel %vm496, %v1045, 0
        %1152 = vmatprep.subr.bf16.mxu0 0
        %1153 = vmatpush1.bf16.msra.mxu0 %v1125
        %1154 = vmatprep.subr.bf16.mxu0 0
        %1155 = vmatpush1.bf16.msra.mxu0 %v1126
        %1156 = vmatprep.subr.bf16.mxu0 0
        %1157 = vmatpush1.bf16.msra.mxu0 %v1127
        %1158 = vmatprep.subr.bf16.mxu0 0
        %1159 = vmatpush1.bf16.msra.mxu0 %v1128
        %1160 = vmatprep.subr.bf16.mxu0 0
        %1161 = vmatpush1.bf16.msra.mxu0 %v1129
        %1162 = vmatprep.subr.bf16.mxu0 0
        %1163 = vmatpush1.bf16.msra.mxu0 %v1130
        %1164 = vmatprep.subr.bf16.mxu0 0
        %1165 = vmatpush1.bf16.msra.mxu0 %v1131
        %1166 = vmatprep.subr.bf16.mxu0 0
        %1167 = vmatpush1.bf16.msra.mxu0 %v1132
        %1168 = vmatprep.subr.bf16.mxu0 0
        %1169 = vmatpush1.bf16.msra.mxu0 %v1133
        %1170 = vmatprep.subr.bf16.mxu0 0
        %1171 = vmatpush1.bf16.msra.mxu0 %v1134
        %1172 = vmatprep.subr.bf16.mxu0 0
        %1173 = vmatpush1.bf16.msra.mxu0 %v1135
        %1174 = vmatprep.subr.bf16.mxu0 0
        %1175 = vmatpush1.bf16.msra.mxu0 %v1136
        %1176 = vmatprep.subr.bf16.mxu0 0
        %1177 = vmatpush1.bf16.msra.mxu0 0
        %1178 = vmatprep.subr.bf16.mxu0 0
        %1179 = vmatpush1.bf16.msra.mxu0 0
        %1180 = vmatprep.subr.bf16.mxu0 0
        %1181 = vmatpush1.bf16.msra.mxu0 0
        %1182 = vmatprep.subr.bf16.mxu0 0
        %1183 = vmatpush1.bf16.msra.mxu0 0
        %1184 = vmatprep.mubr.bf16.mxu0 %v1150
        %1185 = vmatmul.mubr.bf16.gmra.mrb[0].mxu0 %v1044
        %v1186 = vpop.f32.mrb[0].mxu0
        %v1187 = vadd.f32 %v1075, %v1186
        %v1188 = vpop.f32.mrb[0].mxu0
        %v1189 = vpop.f32.mrb[0].mxu0
        %v1190 = vpop.f32.mrb[0].mxu0
        %1191 = vdwg.mxu0
        %v1192 = vmax.f32 %v1187, 0.0
        %v1193 = vrot.slane %v1192, 4
        %v1194 = vadd.f32 %v1192, %v1193
        %v1195 = vrot.slane %v1194, 2
        %v1196 = vadd.f32 %v1194, %v1195
        %v1197 = vrot.slane %v1196, 1
        %v1198 = vadd.f32 %v1196, %v1197
        %v1199 = vld [vmem:[%s9] sm:$0xff]
        %v1200 = vld [vmem:[%s9 + $0x8] sm:$0xff]
        %v1201 = vld [vmem:[%s9 + $0x10] sm:$0xff]
        %v1202 = vld [vmem:[%s9 + $0x18] sm:$0xff]
        %v1203 = vld [vmem:[%s9 + $0x20] sm:$0xff]
        %v1204 = vld [vmem:[%s9 + $0x28] sm:$0xff]
        %v1205 = vld [vmem:[%s9 + $0x30] sm:$0xff]
        %v1206 = vld [vmem:[%s9 + $0x38] sm:$0xff]
        %v1207 = vld [vmem:[%s9 + $0x40] sm:$0xff]
        %v1208 = vld [vmem:[%s9 + $0x48] sm:$0xff]
        %v1209 = vld [vmem:[%s9 + $0x50] sm:$0xff]
        %v1210 = vld [vmem:[%s9 + $0x58] sm:$0xff]
        %v1211 = vld [vmem:[%s9 + $0x60] sm:$0xff]
        %v1212 = vld [vmem:[%s9 + $0x68] sm:$0xff]
        %v1213 = vld [vmem:[%s9 + $0x70] sm:$0xff]
        %v1214 = vld [vmem:[%s9 + $0x78] sm:$0xff]
        %v1215 = vld [vmem:[%s10] sm:$0x1]
        %1216 = vmatprep.subr.mxu0 0.0
        %1217 = vmatpush1.msra.mxu0 %v1199
        %1218 = vmatprep.subr.mxu0 0.0
        %1219 = vmatpush1.msra.mxu0 %v1200
        %1220 = vmatprep.subr.mxu0 0.0
        %1221 = vmatpush1.msra.mxu0 %v1201
        %1222 = vmatprep.subr.mxu0 0.0
        %1223 = vmatpush1.msra.mxu0 %v1202
        %1224 = vmatprep.subr.mxu0 0.0
        %1225 = vmatpush1.msra.mxu0 %v1203
        %1226 = vmatprep.subr.mxu0 0.0
        %1227 = vmatpush1.msra.mxu0 %v1204
        %1228 = vmatprep.subr.mxu0 0.0
        %1229 = vmatpush1.msra.mxu0 %v1205
        %1230 = vmatprep.subr.mxu0 0.0
        %1231 = vmatpush1.msra.mxu0 %v1206
        %1232 = vmatprep.subr.mxu0 0.0
        %1233 = vmatpush1.msra.mxu0 %v1207
        %1234 = vmatprep.subr.mxu0 0.0
        %1235 = vmatpush1.msra.mxu0 %v1208
        %1236 = vmatprep.subr.mxu0 0.0
        %1237 = vmatpush1.msra.mxu0 %v1209
        %1238 = vmatprep.subr.mxu0 0.0
        %1239 = vmatpush1.msra.mxu0 %v1210
        %1240 = vmatprep.subr.mxu0 0.0
        %1241 = vmatpush1.msra.mxu0 %v1211
        %1242 = vmatprep.subr.mxu0 0.0
        %1243 = vmatpush1.msra.mxu0 %v1212
        %1244 = vmatprep.subr.mxu0 0.0
        %1245 = vmatpush1.msra.mxu0 %v1213
        %1246 = vmatprep.subr.mxu0 0.0
        %1247 = vmatpush1.msra.mxu0 %v1214
        %1248 = vmatprep.subr.mxu0 0.0
        %1249 = vmatpush1.msra.mxu0 0.0
        %1250 = vmatprep.subr.mxu0 0.0
        %1251 = vmatpush1.msra.mxu0 0.0
        %1252 = vmatprep.subr.mxu0 0.0
        %1253 = vmatpush1.msra.mxu0 0.0
        %1254 = vmatprep.subr.mxu0 0.0
        %1255 = vmatpush1.msra.mxu0 0.0
        %1256 = vmatprep.subr.mxu0 0.0
        %1257 = vmatpush1.msra.mxu0 0.0
        %1258 = vmatprep.subr.mxu0 0.0
        %1259 = vmatpush1.msra.mxu0 0.0
        %1260 = vmatprep.subr.mxu0 0.0
        %1261 = vmatpush1.msra.mxu0 0.0
        %1262 = vmatprep.subr.mxu0 0.0
        %1263 = vmatpush1.msra.mxu0 0.0
        %1264 = vmatprep.subr.mxu0 0.0
        %1265 = vmatpush1.msra.mxu0 0.0
        %1266 = vmatprep.subr.mxu0 0.0
        %1267 = vmatpush1.msra.mxu0 0.0
        %1268 = vmatprep.subr.mxu0 0.0
        %1269 = vmatpush1.msra.mxu0 0.0
        %1270 = vmatprep.subr.mxu0 0.0
        %1271 = vmatpush1.msra.mxu0 0.0
        %1272 = vmatprep.subr.mxu0 0.0
        %1273 = vmatpush1.msra.mxu0 0.0
        %1274 = vmatprep.subr.mxu0 0.0
        %1275 = vmatpush1.msra.mxu0 0.0
        %1276 = vmatprep.subr.mxu0 0.0
        %1277 = vmatpush1.msra.mxu0 0.0
        %1278 = vmatprep.subr.mxu0 0.0
        %1279 = vmatpush1.msra.mxu0 0.0
        %1280 = vmatprep.mubr.f32.mxu0 0.0
        %1281 = vmatmul.mubr.f32.gmra.mrb[0].mxu0 %v1198
        %v1282 = vpop.f32.mrb[0].mxu0
        %v1283 = vadd.f32 %v1215, %v1282
        %v1284 = vpop.f32.mrb[0].mxu0
        %1285 = vdwg.mxu0
        %vm1286 = vcmask 73728
        %1287 = vst.msk [vmem:[%s416] sm:$0x1] %vm1286, %v1283
        %s1288 = sand.u32 %s271, 1
        %s1289 = scalar_lea.sflag [#allocation7], %s1288
        %s1290 = sand.u32 %s271, 1
        %s1291 = scalar_lea.vmem [#allocation11], %s1290
        // Predicated region
        $region77: #{forward.1} parent=63 // pred_check
          %p1292 = pneg %p281
        $region78: #{forward.1} parent=63 // pred_check_branch
          %1294 = sbr.rel (%p1292) target = $region80
        $region79: #{forward.1} parent=63 // pred_region
          %s1296 = ssub.s32 16, 16
          %1297 = vsyncadd %s1289, %s1296
          %s1298 = smul.addr %s27, 16
          %s1299 = scalar_lea.hbm %s11, %s1298
          %s1301 = sshll.u32 %s1291, 4
          %s1302 = int_to_ptr.vmem [resolvable:$true] %s1301
          %1304 = dma.vmem_to_hbm [thread:$0]  %s1302, 16, %s1299, %s1289
        $region80: #{forward.1} parent=63 // pred_fallthru
          _
      $region64: #{forward.1} parent=5 // pred_fallthru
        _
      %p1305 = scmp.le.s32.totalorder 2, %s22
      // Predicated region
      $region81: #{forward.1} parent=5 // pred_check
        %p1306 = pneg %p1305
      $region82: #{forward.1} parent=5 // pred_check_branch
        %1308 = sbr.rel (%p1306) target = $region84
      $region83: #{forward.1} parent=5 // pred_region
        %s1309 = ssub.s32 %s22, 2
        // Predicated region
        $region85: #{forward.1} parent=83 // pred_check
          %p1310 = pneg %p287
        $region86: #{forward.1} parent=83 // pred_check_branch
          %1312 = sbr.rel (%p1310) target = $region88
        $region87: #{forward.1} parent=83 // pred_region
          %s1313 = sand.u32 %s272, 1
          %s1314 = scalar_lea.sflag [#allocation7], %s1313
          %s1315 = sand.u32 %s272, 1
          %s1316 = scalar_lea.vmem [#allocation11], %s1315
          %1317 = dma.done %s1314, 16
        $region88: #{forward.1} parent=83 // pred_fallthru
          _
      $region84: #{forward.1} parent=5 // pred_fallthru
        _
    $region6: #{forward.1} parent=1 // loop_footer
      %s26 = sadd.s32 1, %s22
    $region7: #{forward.1} parent=1 // loop_footer_branch
      %21 = sbr.rel target = $region3
    $region8: #{forward.1} parent=1 // loop_exit
      _
    %1318 = vsyncpa [#allocation6], 1
    %s1319 = scalar_lea.sflag [#allocation6], 1
    %1320 = vsyncpa %s1319, 1
    %1321 = vsyncpa [#allocation9], 1
    %1322 = vsyncpa [#allocation7], 1
    %s1323 = scalar_lea.sflag [#allocation7], 1
    %1324 = vsyncpa %s1323, 1

</llo_original>
